<compile_context>
chip_gen: v6e
topology: v6e:2x2x1
jax: 0.10.0
libtpu: 0.0.40
codegen_flags: <defaults>
</compile_context>

<pallas_src>
import functools

import jax
import jax.numpy as jnp
from jax.experimental import pallas as pl
from jax.experimental.pallas import tpu as pltpu

LANE = 128                       # TPU lane width: channel dims padded to this
MATMUL_DTYPE = jnp.bfloat16      # MXU input dtype (accumulation is always f32)


def _round_up(n, m):
    return ((n + m - 1) // m) * m


def _pad2d(a, rows, cols):
    return jnp.pad(a, ((0, rows - a.shape[0]), (0, cols - a.shape[1])))


# ----------------------------------------------------------------------------
# Fused TemporalBlock kernel (one pallas_call per block, grid over batch)
# ----------------------------------------------------------------------------
def _temporal_block_kernel(x_ref, wconv_ref, bconv_ref, wqkv_ref, bqkv_ref,
                           wp_ref, bp_ref, rpb_ref, *rest,
                           L, k, d, cp, has_down):
    if has_down:
        wdown_ref, bdown_ref, o_ref, xz_ref, xim_ref, hb_ref = rest
    else:
        wdown_ref = bdown_ref = None
        o_ref, xz_ref, xim_ref, hb_ref = rest

    f32 = jnp.float32
    mm = MATMUL_DTYPE
    nh = (k - 1) // 2              # neighbourhood half size
    pad = (k - 1) * d              # causal padding == chomp size
    cin_p = x_ref.shape[-1]

    pad_al = _round_up(pad, 8)     # zero rows in the conv scratch (8-aligned)
    off_x = pad_al - pad
    Z = 3 * nh * d                 # F.pad zeros + nh*d extra so every banded
    Z_al = _round_up(Z, 8)         # key/value slice stays in-bounds
    off_h = Z_al - Z
    SH = nh * d + off_h            # buffer row of padded-sequence position 0

    x0 = x_ref[0]                                              # (L, cin_p) f32

    # ---- net_1: weight-norm dilated causal conv + ReLU (single MXU dot) ----
    if pad_al > 0:
        xz_ref[0:pad_al, :] = jnp.zeros((pad_al, cin_p), f32)
    xz_ref[pad_al:pad_al + L, :] = x0
    xz = xz_ref[...]
    for t in range(k):             # im2col: tap t -> lane block t (128-aligned)
        s = off_x + t * d
        xim_ref[:, t * cin_p:(t + 1) * cin_p] = xz[s:s + L, :]
    h = jnp.dot(xim_ref[...].astype(mm), wconv_ref[...],
                preferred_element_type=f32) + bconv_ref[...]
    h = jnp.maximum(h, 0.0)                                    # (L, cp) f32

    # ---- F.pad(left, pad) -> NeighborhoodAttention1D (banded) -> chomp+ReLU
    if Z_al > 0:
        hb_ref[0:Z_al, :] = jnp.zeros((Z_al, cp), f32)
    hb_ref[Z_al:Z_al + L, :] = h
    qkv = jnp.dot(hb_ref[...].astype(mm), wqkv_ref[...],
                  preferred_element_type=f32) + bqkv_ref[...]  # (Z_al+L, 3cp)
    q = qkv[SH:SH + L, 0:cp]       # queries = padded positions [0, L) (chomp2)
    kb = qkv[:, cp:2 * cp]
    vb = qkv[:, 2 * cp:3 * cp]

    # interior rows (i >= nh*d): neighbour t sits at padded position
    # i + (t - nh)*d  ->  buffer row  i + t*d + off_h ;  rel-pos bias nh + t.
    taps = []
    for t in range(k):
        s = t * d + off_h
        lt = jnp.sum(q * kb[s:s + L, :], axis=-1, keepdims=True) \
            + rpb_ref[nh + t]                                  # (L, 1)
        taps.append(lt)
    m = taps[0]
    for t in range(1, k):
        m = jnp.maximum(m, taps[t])
    es = [jnp.exp(lt - m) for lt in taps]
    den = es[0]
    for t in range(1, k):
        den = den + es[t]
    ctx = es[0] * vb[off_h:off_h + L, :]
    for t in range(1, k):
        s = t * d + off_h
        ctx = ctx + es[t] * vb[s:s + L, :]
    ctx = ctx / den                                            # (L, cp)

    # left-edge rows (i < nh*d): NATTEN shifts the window to start at (i % d)
    # and the bias to start at k-1 - i//d.  Few static rows -> recompute the
    # k-neighbour softmax with scalar dots and patch them in with selects.
    n_edge = min(nh * d, L)
    if n_edge > 0:
        row_ids = jax.lax.broadcasted_iota(jnp.int32, (L, cp), 0)
        for i in range(n_edge):
            qi = q[i:i + 1, :]
            rows = [SH + (i % d) + t * d for t in range(k)]
            ls = [jnp.sum(qi * kb[r:r + 1, :], axis=-1, keepdims=True)
                  + rpb_ref[k - 1 - i // d + t]
                  for t, r in enumerate(rows)]                 # (1, 1) each
            me = ls[0]
            for t in range(1, k):
                me = jnp.maximum(me, ls[t])
            ee = [jnp.exp(lv - me) for lv in ls]
            se = ee[0]
            for t in range(1, k):
                se = se + ee[t]
            row = ee[0] * vb[rows[0]:rows[0] + 1, :]
            for t in range(1, k):
                row = row + ee[t] * vb[rows[t]:rows[t] + 1, :]
            ctx = jnp.where(row_ids == i, row / se, ctx)

    # output projection -> (chomp2 already applied) ReLU -> + residual -> ReLU
    y = jnp.dot(ctx.astype(mm), wp_ref[...],
                preferred_element_type=f32) + bp_ref[...]
    out = jnp.maximum(y, 0.0)
    if has_down:
        res = jnp.dot(x0.astype(mm), wdown_ref[...],
                      preferred_element_type=f32) + bdown_ref[...]
    else:
        res = x0
    o_ref[0] = jnp.maximum(out + res, 0.0).astype(o_ref.dtype)


def _temporal_block_call(x, wconv, bconv, wqkv, bqkv, wp, bp, rpb, wdown, bdown,
                         *, L, k, d, cin_p, cout_p, has_down):
    B = x.shape[0]
    nh = (k - 1) // 2
    pad_al = _round_up((k - 1) * d, 8)
    z_al = _round_up(3 * nh * d, 8)
    kern = functools.partial(_temporal_block_kernel, L=L, k=k, d=d, cp=cout_p,
                             has_down=has_down)

    in_specs = [
        pl.BlockSpec((1, L, cin_p), lambda b: (b, 0, 0)),        # x
        pl.BlockSpec((k * cin_p, cout_p), lambda b: (0, 0)),     # conv W (im2col)
        pl.BlockSpec((1, cout_p), lambda b: (0, 0)),             # conv bias
        pl.BlockSpec((cout_p, 3 * cout_p), lambda b: (0, 0)),    # qkv W^T (q scaled)
        pl.BlockSpec((1, 3 * cout_p), lambda b: (0, 0)),         # qkv bias
        pl.BlockSpec((cout_p, cout_p), lambda b: (0, 0)),        # proj W^T
        pl.BlockSpec((1, cout_p), lambda b: (0, 0)),             # proj bias
        pl.BlockSpec(memory_space=pltpu.MemorySpace.SMEM),       # rel-pos bias
    ]
    args = [x, wconv, bconv, wqkv, bqkv, wp, bp, rpb]
    if has_down:
        in_specs += [pl.BlockSpec((cin_p, cout_p), lambda b: (0, 0)),
                     pl.BlockSpec((1, cout_p), lambda b: (0, 0))]
        args += [wdown, bdown]

    return pl.pallas_call(
        kern,
        out_shape=jax.ShapeDtypeStruct((B, L, cout_p), jnp.float32),
        grid_spec=pltpu.PrefetchScalarGridSpec(
            num_scalar_prefetch=0,
            grid=(B,),
            in_specs=in_specs,
            out_specs=pl.BlockSpec((1, L, cout_p), lambda b: (b, 0, 0)),
            scratch_shapes=[
                pltpu.VMEM((pad_al + L, cin_p), jnp.float32),    # left-padded x
                pltpu.VMEM((L, k * cin_p), jnp.float32),         # im2col buffer
                pltpu.VMEM((z_al + L, cout_p), jnp.float32),     # left-padded h
            ],
        ),
        # batch items are independent: "parallel" lets the grid shard across
        # both TensorCores on v7x (harmless on single-TC v5e/v6e).
        compiler_params=pltpu.CompilerParams(
            dimension_semantics=("parallel",)),
    )(*args)


# ----------------------------------------------------------------------------
# Per-block wrapper (weight-norm, scale folding, lane padding) + network
# ----------------------------------------------------------------------------
@functools.partial(jax.jit, static_argnames=("k", "d"))
def temporal_block_forward(x_nlc, params, *, k, d):
    """One TemporalBlock. x_nlc: (B, L, cin_p) with channels lane-padded."""
    B, L, cin_p = x_nlc.shape
    c_out, c_in = params["conv1_v"].shape[0], params["conv1_v"].shape[1]
    cout_p = _round_up(c_out, LANE)
    has_down = "down_w" in params
    assert k % 2 == 1, "NeighborhoodAttention1D needs an odd kernel_size"
    assert cin_p == _round_up(c_in, LANE)
    assert L >= d, "sequence too short for this dilation"
    if not has_down:
        assert cin_p == cout_p

    mm = MATMUL_DTYPE
    # weight_norm: W = g * v / ||v||_F (per output channel), done in f32
    v = params["conv1_v"]                                    # (cout, cin, k)
    norm = jnp.sqrt(jnp.sum(v * v, axis=(1, 2), keepdims=True))
    w_eff = params["conv1_g"][:, None, None] * v / norm
    w_taps = jnp.transpose(w_eff, (2, 1, 0))                 # (k, cin, cout)
    w_taps = jnp.pad(w_taps, ((0, 0), (0, cin_p - c_in), (0, cout_p - c_out)))
    wconv = w_taps.reshape(k * cin_p, cout_p).astype(mm)     # im2col layout
    bconv = jnp.pad(params["conv1_b"], (0, cout_p - c_out))[None, :]

    # qkv / proj linears (PyTorch Linear: y = x @ W^T + b); the attention scale
    # (head_dim**-0.5, num_heads=1) is folded into the query weight & bias.
    C = c_out
    scale = float(C) ** -0.5
    wq, wk, wv = (params["wqkv"][i * C:(i + 1) * C] for i in range(3))
    bq, bk, bv = (params["bqkv"][i * C:(i + 1) * C] for i in range(3))
    wqkv = jnp.concatenate(
        [_pad2d((wq * scale).T, cout_p, cout_p),
         _pad2d(wk.T, cout_p, cout_p),
         _pad2d(wv.T, cout_p, cout_p)], axis=1).astype(mm)   # (cp, 3cp)
    bqkv = jnp.concatenate(
        [jnp.pad(bq * scale, (0, cout_p - C)),
         jnp.pad(bk, (0, cout_p - C)),
         jnp.pad(bv, (0, cout_p - C))])[None, :]             # (1, 3cp) f32
    wp = _pad2d(params["wp"].T, cout_p, cout_p).astype(mm)
    bp = jnp.pad(params["bp"], (0, cout_p - C))[None, :]
    rpb = params["rpb"].astype(jnp.float32)                  # (2k-1,) -> SMEM

    if has_down:
        wdown = _pad2d(params["down_w"].T, cin_p, cout_p).astype(mm)
        bdown = jnp.pad(params["down_b"], (0, cout_p - c_out))[None, :]
    else:
        wdown = bdown = None

    return _temporal_block_call(x_nlc, wconv, bconv, wqkv, bqkv, wp, bp, rpb,
                                wdown, bdown, L=L, k=k, d=d,
                                cin_p=cin_p, cout_p=cout_p, has_down=has_down)


def init_temporal_block_params(key, c_in, c_out, k):
    ks = jax.random.split(key, 10)
    p = dict(
        conv1_v=0.01 * jax.random.normal(ks[0], (c_out, c_in, k), jnp.float32),
        conv1_g=jax.random.uniform(ks[1], (c_out,), jnp.float32, 0.5, 1.5),
        conv1_b=0.01 * jax.random.normal(ks[2], (c_out,), jnp.float32),
        wqkv=0.1 * jax.random.normal(ks[3], (3 * c_out, c_out), jnp.float32),
        bqkv=0.01 * jax.random.normal(ks[4], (3 * c_out,), jnp.float32),
        wp=0.1 * jax.random.normal(ks[5], (c_out, c_out), jnp.float32),
        bp=0.01 * jax.random.normal(ks[6], (c_out,), jnp.float32),
        rpb=0.02 * jax.random.normal(ks[7], (2 * k - 1,), jnp.float32),
    )
    if c_in != c_out:
        p["down_w"] = 0.01 * jax.random.normal(ks[8], (c_out, c_in), jnp.float32)
        p["down_b"] = 0.01 * jax.random.normal(ks[9], (c_out,), jnp.float32)
    return p


class TemporalConvNetPallas:
    def __init__(self, num_inputs, num_channels, kernel_size=3, dilation_size=2,
                 key=None):
        self.kernel_size = kernel_size
        self.layer_cfg = []
        self.params = []
        key = jax.random.PRNGKey(0) if key is None else key
        for i, c_out in enumerate(num_channels):
            d = dilation_size ** i
            c_in = num_inputs if i == 0 else num_channels[i - 1]
            key, sub = jax.random.split(key)
            self.params.append(init_temporal_block_params(sub, c_in, c_out,
                                                          kernel_size))
            self.layer_cfg.append((c_in, c_out, d))

    def __call__(self, x_ncw):
        # external layout matches PyTorch (N, C, L); internally NLC with the
        # channel axis zero-padded to a 128-lane multiple (lane-dense stores).
        x = jnp.transpose(x_ncw, (0, 2, 1)).astype(jnp.float32)
        c_in0 = self.layer_cfg[0][0]
        x = jnp.pad(x, ((0, 0), (0, 0), (0, _round_up(c_in0, LANE) - c_in0)))
        for (_, _, d), p in zip(self.layer_cfg, self.params):
            x = temporal_block_forward(x, p, k=self.kernel_size, d=d)
        c_last = self.layer_cfg[-1][1]
        return jnp.transpose(x[:, :, :c_last], (0, 2, 1))


if __name__ == "__main__":
    key = jax.random.PRNGKey(0)
    kx, kp = jax.random.split(key)
    B, C_in, L = 2, 4, 16
    x = jax.random.normal(kx, (B, C_in, L), jnp.float32)

    # kernel_size=3 (NATTEN requires odd window), two levels: 4->8 (downsample
    # residual) and 8->8 (identity residual), dilations 1 and 2.
    net = TemporalConvNetPallas(num_inputs=C_in, num_channels=[8, 8],
                                kernel_size=3, dilation_size=2, key=kp)
    y = net(x)
    y = jax.block_until_ready(y)
    assert y.shape == (B, 8, L), y.shape
    assert bool(jnp.all(jnp.isfinite(y)))
    print("KERNEL_OK")
</pallas_src>

<mosaic_0001>
module attributes {stable_mosaic.version = 11 : i64} {
  func.func @_temporal_block_kernel(%arg0: i32, %arg1: memref<1x16x128xf32, #tpu.memory_space<vmem>>, %arg2: memref<384x128xbf16, #tpu.memory_space<vmem>>, %arg3: memref<1x128xf32, #tpu.memory_space<vmem>>, %arg4: memref<128x384xbf16, #tpu.memory_space<vmem>>, %arg5: memref<1x384xf32, #tpu.memory_space<vmem>>, %arg6: memref<128x128xbf16, #tpu.memory_space<vmem>>, %arg7: memref<1x128xf32, #tpu.memory_space<vmem>>, %arg8: memref<5xf32, #tpu.memory_space<smem>>, %arg9: memref<128x128xbf16, #tpu.memory_space<vmem>>, %arg10: memref<1x128xf32, #tpu.memory_space<vmem>>, %arg11: memref<1x16x128xf32, #tpu.memory_space<vmem>>, %arg12: memref<24x128xf32, #tpu.memory_space<vmem>>, %arg13: memref<16x384xf32, #tpu.memory_space<vmem>>, %arg14: memref<24x128xf32, #tpu.memory_space<vmem>>) attributes {dimension_semantics = [#tpu.dimension_semantics<parallel>], iteration_bounds = array<i64: 2>, scalar_prefetch = 0 : i64, scratch_operands = 3 : i64, tpu.core_type = #tpu.core_type<tc>, window_params = [{transform_indices = @transform_0, window_bounds = array<i64: 1, 16, 128>}, {pipeline_mode = #tpu.pipeline_mode<synchronous>, transform_indices = @transform_1, window_bounds = array<i64: 384, 128>}, {pipeline_mode = #tpu.pipeline_mode<synchronous>, transform_indices = @transform_2, window_bounds = array<i64: 1, 128>}, {pipeline_mode = #tpu.pipeline_mode<synchronous>, transform_indices = @transform_3, window_bounds = array<i64: 128, 384>}, {pipeline_mode = #tpu.pipeline_mode<synchronous>, transform_indices = @transform_4, window_bounds = array<i64: 1, 384>}, {pipeline_mode = #tpu.pipeline_mode<synchronous>, transform_indices = @transform_5, window_bounds = array<i64: 128, 128>}, {pipeline_mode = #tpu.pipeline_mode<synchronous>, transform_indices = @transform_6, window_bounds = array<i64: 1, 128>}, {transform_indices = @transform_7, window_bounds = array<i64: 5>}, {pipeline_mode = #tpu.pipeline_mode<synchronous>, transform_indices = @transform_8, window_bounds = array<i64: 128, 128>}, {pipeline_mode = #tpu.pipeline_mode<synchronous>, transform_indices = @transform_9, window_bounds = array<i64: 1, 128>}, {transform_indices = @transform_10, window_bounds = array<i64: 1, 16, 128>}]} {
    %c0 = arith.constant 0 : index
    %c0_0 = arith.constant 0 : index
    %c0_1 = arith.constant 0 : index
    %0 = vector.load %arg1[%c0, %c0_0, %c0_1] : memref<1x16x128xf32, #tpu.memory_space<vmem>>, vector<1x16x128xf32>
    %1 = vector.shape_cast %0 : vector<1x16x128xf32> to vector<16x128xf32>
    %cst = arith.constant 0.000000e+00 : f32
    %2 = vector.broadcast %cst : f32 to vector<8x128xf32>
    %c0_2 = arith.constant 0 : index
    %c0_3 = arith.constant 0 : index
    %3 = vector.load %arg12[%c0_2, %c0_3] : memref<24x128xf32, #tpu.memory_space<vmem>>, vector<8x128xf32>
    tpu.vector_store %arg12[%c0_2, %c0_3], %2 {strides = array<i32>} : memref<24x128xf32, #tpu.memory_space<vmem>>, vector<8x128xf32>,
    %c8 = arith.constant 8 : index
    %c0_4 = arith.constant 0 : index
    %4 = vector.load %arg12[%c8, %c0_4] : memref<24x128xf32, #tpu.memory_space<vmem>>, vector<16x128xf32>
    tpu.vector_store %arg12[%c8, %c0_4], %1 {strides = array<i32>} : memref<24x128xf32, #tpu.memory_space<vmem>>, vector<16x128xf32>,
    %c0_5 = arith.constant 0 : index
    %c0_6 = arith.constant 0 : index
    %5 = vector.load %arg12[%c0_5, %c0_6] : memref<24x128xf32, #tpu.memory_space<vmem>>, vector<24x128xf32>
    %6 = vector.extract_strided_slice %5 {offsets = [6, 0], sizes = [16, 128], strides = [1, 1]} : vector<24x128xf32> to vector<16x128xf32>
    %c0_7 = arith.constant 0 : index
    %c0_8 = arith.constant 0 : index
    %7 = vector.load %arg13[%c0_7, %c0_8] : memref<16x384xf32, #tpu.memory_space<vmem>>, vector<16x128xf32>
    tpu.vector_store %arg13[%c0_7, %c0_8], %6 {strides = array<i32>} : memref<16x384xf32, #tpu.memory_space<vmem>>, vector<16x128xf32>,
    %8 = vector.extract_strided_slice %5 {offsets = [7, 0], sizes = [16, 128], strides = [1, 1]} : vector<24x128xf32> to vector<16x128xf32>
    %c0_9 = arith.constant 0 : index
    %c128 = arith.constant 128 : index
    %9 = vector.load %arg13[%c0_9, %c128] : memref<16x384xf32, #tpu.memory_space<vmem>>, vector<16x128xf32>
    tpu.vector_store %arg13[%c0_9, %c128], %8 {strides = array<i32>} : memref<16x384xf32, #tpu.memory_space<vmem>>, vector<16x128xf32>,
    %10 = vector.extract_strided_slice %5 {offsets = [8, 0], sizes = [16, 128], strides = [1, 1]} : vector<24x128xf32> to vector<16x128xf32>
    %c0_10 = arith.constant 0 : index
    %c256 = arith.constant 256 : index
    %11 = vector.load %arg13[%c0_10, %c256] : memref<16x384xf32, #tpu.memory_space<vmem>>, vector<16x128xf32>
    tpu.vector_store %arg13[%c0_10, %c256], %10 {strides = array<i32>} : memref<16x384xf32, #tpu.memory_space<vmem>>, vector<16x128xf32>,
    %c0_11 = arith.constant 0 : index
    %c0_12 = arith.constant 0 : index
    %12 = vector.load %arg13[%c0_11, %c0_12] : memref<16x384xf32, #tpu.memory_space<vmem>>, vector<16x384xf32>
    %13 = arith.truncf %12 : vector<16x384xf32> to vector<16x384xbf16>
    %c0_13 = arith.constant 0 : index
    %c0_14 = arith.constant 0 : index
    %14 = vector.load %arg2[%c0_13, %c0_14] : memref<384x128xbf16, #tpu.memory_space<vmem>>, vector<384x128xbf16>
    %cst_15 = arith.constant dense<0.000000e+00> : vector<16x128xf32>
    %15 = tpu.matmul %13, %14, %cst_15 {dimension_numbers = #tpu.dot_dimension_numbers<[1], [0], [0], [1], [0, 0, 1, 1], [], []>} : vector<16x384xbf16>, vector<384x128xbf16>, vector<16x128xf32> -> vector<16x128xf32>
    %c0_16 = arith.constant 0 : index
    %c0_17 = arith.constant 0 : index
    %16 = vector.load %arg3[%c0_16, %c0_17] : memref<1x128xf32, #tpu.memory_space<vmem>>, vector<1x128xf32>
    %17 = vector.broadcast %16 : vector<1x128xf32> to vector<16x128xf32>
    %18 = arith.addf %15, %17 : vector<16x128xf32>
    %cst_18 = arith.constant 0.000000e+00 : f32
    %19 = vector.broadcast %cst_18 : f32 to vector<16x128xf32>
    %20 = arith.maximumf %18, %19 : vector<16x128xf32>
    %cst_19 = arith.constant 0.000000e+00 : f32
    %21 = vector.broadcast %cst_19 : f32 to vector<8x128xf32>
    %c0_20 = arith.constant 0 : index
    %c0_21 = arith.constant 0 : index
    %22 = vector.load %arg14[%c0_20, %c0_21] : memref<24x128xf32, #tpu.memory_space<vmem>>, vector<8x128xf32>
    tpu.vector_store %arg14[%c0_20, %c0_21], %21 {strides = array<i32>} : memref<24x128xf32, #tpu.memory_space<vmem>>, vector<8x128xf32>,
    %c8_22 = arith.constant 8 : index
    %c0_23 = arith.constant 0 : index
    %23 = vector.load %arg14[%c8_22, %c0_23] : memref<24x128xf32, #tpu.memory_space<vmem>>, vector<16x128xf32>
    tpu.vector_store %arg14[%c8_22, %c0_23], %20 {strides = array<i32>} : memref<24x128xf32, #tpu.memory_space<vmem>>, vector<16x128xf32>,
    %c0_24 = arith.constant 0 : index
    %c0_25 = arith.constant 0 : index
    %24 = vector.load %arg14[%c0_24, %c0_25] : memref<24x128xf32, #tpu.memory_space<vmem>>, vector<24x128xf32>
    %25 = arith.truncf %24 : vector<24x128xf32> to vector<24x128xbf16>
    %c0_26 = arith.constant 0 : index
    %c0_27 = arith.constant 0 : index
    %26 = vector.load %arg4[%c0_26, %c0_27] : memref<128x384xbf16, #tpu.memory_space<vmem>>, vector<128x384xbf16>
    %cst_28 = arith.constant dense<0.000000e+00> : vector<24x384xf32>
    %27 = tpu.matmul %25, %26, %cst_28 {dimension_numbers = #tpu.dot_dimension_numbers<[1], [0], [0], [1], [0, 0, 1, 1], [], []>} : vector<24x128xbf16>, vector<128x384xbf16>, vector<24x384xf32> -> vector<24x384xf32>
    %c0_29 = arith.constant 0 : index
    %c0_30 = arith.constant 0 : index
    %28 = vector.load %arg5[%c0_29, %c0_30] : memref<1x384xf32, #tpu.memory_space<vmem>>, vector<1x384xf32>
    %29 = vector.broadcast %28 : vector<1x384xf32> to vector<24x384xf32>
    %30 = arith.addf %27, %29 : vector<24x384xf32>
    %31 = vector.extract_strided_slice %30 {offsets = [6, 0], sizes = [16, 128], strides = [1, 1]} : vector<24x384xf32> to vector<16x128xf32>
    %32 = vector.extract_strided_slice %30 {offsets = [0, 128], sizes = [24, 128], strides = [1, 1]} : vector<24x384xf32> to vector<24x128xf32>
    %33 = vector.extract_strided_slice %30 {offsets = [0, 256], sizes = [24, 128], strides = [1, 1]} : vector<24x384xf32> to vector<24x128xf32>
    %34 = vector.extract_strided_slice %32 {offsets = [5, 0], sizes = [16, 128], strides = [1, 1]} : vector<24x128xf32> to vector<16x128xf32>
    %35 = arith.mulf %31, %34 : vector<16x128xf32>
    %cst_31 = arith.constant dense<0.000000e+00> : vector<16xf32>
    %36 = vector.multi_reduction <add>, %35, %cst_31 [1] : vector<16x128xf32> to vector<16xf32>
    %37 = vector.shape_cast %36 : vector<16xf32> to vector<16x1xf32>
    %c1 = arith.constant 1 : index
    %38 = memref.load %arg8[%c1] : memref<5xf32, #tpu.memory_space<smem>>
    %39 = vector.broadcast %38 : f32 to vector<16x1xf32>
    %40 = arith.addf %37, %39 : vector<16x1xf32>
    %41 = vector.extract_strided_slice %32 {offsets = [6, 0], sizes = [16, 128], strides = [1, 1]} : vector<24x128xf32> to vector<16x128xf32>
    %42 = arith.mulf %31, %41 : vector<16x128xf32>
    %cst_32 = arith.constant dense<0.000000e+00> : vector<16xf32>
    %43 = vector.multi_reduction <add>, %42, %cst_32 [1] : vector<16x128xf32> to vector<16xf32>
    %44 = vector.shape_cast %43 : vector<16xf32> to vector<16x1xf32>
    %c2 = arith.constant 2 : index
    %45 = memref.load %arg8[%c2] : memref<5xf32, #tpu.memory_space<smem>>
    %46 = vector.broadcast %45 : f32 to vector<16x1xf32>
    %47 = arith.addf %44, %46 : vector<16x1xf32>
    %48 = vector.extract_strided_slice %32 {offsets = [7, 0], sizes = [16, 128], strides = [1, 1]} : vector<24x128xf32> to vector<16x128xf32>
    %49 = arith.mulf %31, %48 : vector<16x128xf32>
    %cst_33 = arith.constant dense<0.000000e+00> : vector<16xf32>
    %50 = vector.multi_reduction <add>, %49, %cst_33 [1] : vector<16x128xf32> to vector<16xf32>
    %51 = vector.shape_cast %50 : vector<16xf32> to vector<16x1xf32>
    %c3 = arith.constant 3 : index
    %52 = memref.load %arg8[%c3] : memref<5xf32, #tpu.memory_space<smem>>
    %53 = vector.broadcast %52 : f32 to vector<16x1xf32>
    %54 = arith.addf %51, %53 : vector<16x1xf32>
    %55 = arith.maximumf %40, %47 : vector<16x1xf32>
    %56 = arith.maximumf %55, %54 : vector<16x1xf32>
    %57 = arith.subf %40, %56 : vector<16x1xf32>
    %58 = math.exp %57 : vector<16x1xf32>
    %59 = arith.subf %47, %56 : vector<16x1xf32>
    %60 = math.exp %59 : vector<16x1xf32>
    %61 = arith.subf %54, %56 : vector<16x1xf32>
    %62 = math.exp %61 : vector<16x1xf32>
    %63 = arith.addf %58, %60 : vector<16x1xf32>
    %64 = arith.addf %63, %62 : vector<16x1xf32>
    %65 = vector.extract_strided_slice %33 {offsets = [5, 0], sizes = [16, 128], strides = [1, 1]} : vector<24x128xf32> to vector<16x128xf32>
    %66 = vector.broadcast %58 : vector<16x1xf32> to vector<16x128xf32>
    %67 = arith.mulf %66, %65 : vector<16x128xf32>
    %68 = vector.extract_strided_slice %33 {offsets = [6, 0], sizes = [16, 128], strides = [1, 1]} : vector<24x128xf32> to vector<16x128xf32>
    %69 = vector.broadcast %60 : vector<16x1xf32> to vector<16x128xf32>
    %70 = arith.mulf %69, %68 : vector<16x128xf32>
    %71 = arith.addf %67, %70 : vector<16x128xf32>
    %72 = vector.extract_strided_slice %33 {offsets = [7, 0], sizes = [16, 128], strides = [1, 1]} : vector<24x128xf32> to vector<16x128xf32>
    %73 = vector.broadcast %62 : vector<16x1xf32> to vector<16x128xf32>
    %74 = arith.mulf %73, %72 : vector<16x128xf32>
    %75 = arith.addf %71, %74 : vector<16x128xf32>
    %76 = vector.broadcast %64 : vector<16x1xf32> to vector<16x128xf32>
    %77 = arith.divf %75, %76 : vector<16x128xf32>
    %78 = tpu.iota {dimensions = array<i32: 0>} : vector<16x128xi32>
    %79 = vector.extract_strided_slice %31 {offsets = [0, 0], sizes = [1, 128], strides = [1, 1]} : vector<16x128xf32> to vector<1x128xf32>
    %80 = vector.extract_strided_slice %32 {offsets = [6, 0], sizes = [1, 128], strides = [1, 1]} : vector<24x128xf32> to vector<1x128xf32>
    %81 = arith.mulf %79, %80 : vector<1x128xf32>
    %cst_34 = arith.constant dense<0.000000e+00> : vector<1xf32>
    %82 = vector.multi_reduction <add>, %81, %cst_34 [1] : vector<1x128xf32> to vector<1xf32>
    %83 = vector.shape_cast %82 : vector<1xf32> to vector<1x1xf32>
    %c2_35 = arith.constant 2 : index
    %84 = memref.load %arg8[%c2_35] : memref<5xf32, #tpu.memory_space<smem>>
    %85 = vector.broadcast %84 : f32 to vector<1x1xf32>
    %86 = arith.addf %83, %85 : vector<1x1xf32>
    %87 = vector.extract_strided_slice %32 {offsets = [7, 0], sizes = [1, 128], strides = [1, 1]} : vector<24x128xf32> to vector<1x128xf32>
    %88 = arith.mulf %79, %87 : vector<1x128xf32>
    %cst_36 = arith.constant dense<0.000000e+00> : vector<1xf32>
    %89 = vector.multi_reduction <add>, %88, %cst_36 [1] : vector<1x128xf32> to vector<1xf32>
    %90 = vector.shape_cast %89 : vector<1xf32> to vector<1x1xf32>
    %c3_37 = arith.constant 3 : index
    %91 = memref.load %arg8[%c3_37] : memref<5xf32, #tpu.memory_space<smem>>
    %92 = vector.broadcast %91 : f32 to vector<1x1xf32>
    %93 = arith.addf %90, %92 : vector<1x1xf32>
    %94 = vector.extract_strided_slice %32 {offsets = [8, 0], sizes = [1, 128], strides = [1, 1]} : vector<24x128xf32> to vector<1x128xf32>
    %95 = arith.mulf %79, %94 : vector<1x128xf32>
    %cst_38 = arith.constant dense<0.000000e+00> : vector<1xf32>
    %96 = vector.multi_reduction <add>, %95, %cst_38 [1] : vector<1x128xf32> to vector<1xf32>
    %97 = vector.shape_cast %96 : vector<1xf32> to vector<1x1xf32>
    %c4 = arith.constant 4 : index
    %98 = memref.load %arg8[%c4] : memref<5xf32, #tpu.memory_space<smem>>
    %99 = vector.broadcast %98 : f32 to vector<1x1xf32>
    %100 = arith.addf %97, %99 : vector<1x1xf32>
    %101 = arith.maximumf %86, %93 : vector<1x1xf32>
    %102 = arith.maximumf %101, %100 : vector<1x1xf32>
    %103 = arith.subf %86, %102 : vector<1x1xf32>
    %104 = math.exp %103 : vector<1x1xf32>
    %105 = arith.subf %93, %102 : vector<1x1xf32>
    %106 = math.exp %105 : vector<1x1xf32>
    %107 = arith.subf %100, %102 : vector<1x1xf32>
    %108 = math.exp %107 : vector<1x1xf32>
    %109 = arith.addf %104, %106 : vector<1x1xf32>
    %110 = arith.addf %109, %108 : vector<1x1xf32>
    %111 = vector.extract_strided_slice %33 {offsets = [6, 0], sizes = [1, 128], strides = [1, 1]} : vector<24x128xf32> to vector<1x128xf32>
    %112 = vector.broadcast %104 : vector<1x1xf32> to vector<1x128xf32>
    %113 = arith.mulf %112, %111 : vector<1x128xf32>
    %114 = vector.extract_strided_slice %33 {offsets = [7, 0], sizes = [1, 128], strides = [1, 1]} : vector<24x128xf32> to vector<1x128xf32>
    %115 = vector.broadcast %106 : vector<1x1xf32> to vector<1x128xf32>
    %116 = arith.mulf %115, %114 : vector<1x128xf32>
    %117 = arith.addf %113, %116 : vector<1x128xf32>
    %118 = vector.extract_strided_slice %33 {offsets = [8, 0], sizes = [1, 128], strides = [1, 1]} : vector<24x128xf32> to vector<1x128xf32>
    %119 = vector.broadcast %108 : vector<1x1xf32> to vector<1x128xf32>
    %120 = arith.mulf %119, %118 : vector<1x128xf32>
    %121 = arith.addf %117, %120 : vector<1x128xf32>
    %c0_i32 = arith.constant 0 : i32
    %122 = vector.broadcast %c0_i32 : i32 to vector<16x128xi32>
    %123 = arith.cmpi eq, %78, %122 : vector<16x128xi32>
    %124 = vector.broadcast %110 : vector<1x1xf32> to vector<1x128xf32>
    %125 = arith.divf %121, %124 : vector<1x128xf32>
    %126 = vector.shape_cast %125 : vector<1x128xf32> to vector<1x128xf32>
    %127 = vector.broadcast %126 : vector<1x128xf32> to vector<16x128xf32>
    %128 = arith.select %123, %127, %77 : vector<16x128xi1>, vector<16x128xf32>
    %129 = arith.truncf %128 : vector<16x128xf32> to vector<16x128xbf16>
    %c0_39 = arith.constant 0 : index
    %c0_40 = arith.constant 0 : index
    %130 = vector.load %arg6[%c0_39, %c0_40] : memref<128x128xbf16, #tpu.memory_space<vmem>>, vector<128x128xbf16>
    %cst_41 = arith.constant dense<0.000000e+00> : vector<16x128xf32>
    %131 = tpu.matmul %129, %130, %cst_41 {dimension_numbers = #tpu.dot_dimension_numbers<[1], [0], [0], [1], [0, 0, 1, 1], [], []>} : vector<16x128xbf16>, vector<128x128xbf16>, vector<16x128xf32> -> vector<16x128xf32>
    %c0_42 = arith.constant 0 : index
    %c0_43 = arith.constant 0 : index
    %132 = vector.load %arg7[%c0_42, %c0_43] : memref<1x128xf32, #tpu.memory_space<vmem>>, vector<1x128xf32>
    %133 = vector.broadcast %132 : vector<1x128xf32> to vector<16x128xf32>
    %134 = arith.addf %131, %133 : vector<16x128xf32>
    %cst_44 = arith.constant 0.000000e+00 : f32
    %135 = vector.broadcast %cst_44 : f32 to vector<16x128xf32>
    %136 = arith.maximumf %134, %135 : vector<16x128xf32>
    %137 = arith.truncf %1 : vector<16x128xf32> to vector<16x128xbf16>
    %c0_45 = arith.constant 0 : index
    %c0_46 = arith.constant 0 : index
    %138 = vector.load %arg9[%c0_45, %c0_46] : memref<128x128xbf16, #tpu.memory_space<vmem>>, vector<128x128xbf16>
    %cst_47 = arith.constant dense<0.000000e+00> : vector<16x128xf32>
    %139 = tpu.matmul %137, %138, %cst_47 {dimension_numbers = #tpu.dot_dimension_numbers<[1], [0], [0], [1], [0, 0, 1, 1], [], []>} : vector<16x128xbf16>, vector<128x128xbf16>, vector<16x128xf32> -> vector<16x128xf32>
    %c0_48 = arith.constant 0 : index
    %c0_49 = arith.constant 0 : index
    %140 = vector.load %arg10[%c0_48, %c0_49] : memref<1x128xf32, #tpu.memory_space<vmem>>, vector<1x128xf32>
    %141 = vector.broadcast %140 : vector<1x128xf32> to vector<16x128xf32>
    %142 = arith.addf %139, %141 : vector<16x128xf32>
    %143 = arith.addf %136, %142 : vector<16x128xf32>
    %cst_50 = arith.constant 0.000000e+00 : f32
    %144 = vector.broadcast %cst_50 : f32 to vector<16x128xf32>
    %145 = arith.maximumf %143, %144 : vector<16x128xf32>
    %c0_51 = arith.constant 0 : index
    %c0_52 = arith.constant 0 : index
    %c0_53 = arith.constant 0 : index
    %146 = vector.load %arg11[%c0_51, %c0_52, %c0_53] : memref<1x16x128xf32, #tpu.memory_space<vmem>>, vector<1x16x128xf32>
    %147 = vector.shape_cast %146 : vector<1x16x128xf32> to vector<16x128xf32>
    %148 = vector.shape_cast %145 : vector<16x128xf32> to vector<1x16x128xf32>
    tpu.vector_store %arg11[%c0_51, %c0_52, %c0_53], %148 {strides = array<i32>} : memref<1x16x128xf32, #tpu.memory_space<vmem>>, vector<1x16x128xf32>,
    return
  }
  func.func @transform_0(%arg0: i32) -> (i32, i32, i32) {
    %c0_i32 = arith.constant 0 : i32
    %c0_i32_0 = arith.constant 0 : i32
    %c0_i32_1 = arith.constant 0 : i32
    return %arg0, %c0_i32, %c0_i32_0 : i32, i32, i32
  }
  func.func @transform_1(%arg0: i32) -> (i32, i32) {
    %c0_i32 = arith.constant 0 : i32
    %c0_i32_0 = arith.constant 0 : i32
    %c0_i32_1 = arith.constant 0 : i32
    return %c0_i32, %c0_i32_0 : i32, i32
  }
  func.func @transform_2(%arg0: i32) -> (i32, i32) {
    %c0_i32 = arith.constant 0 : i32
    %c0_i32_0 = arith.constant 0 : i32
    %c0_i32_1 = arith.constant 0 : i32
    return %c0_i32, %c0_i32_0 : i32, i32
  }
  func.func @transform_3(%arg0: i32) -> (i32, i32) {
    %c0_i32 = arith.constant 0 : i32
    %c0_i32_0 = arith.constant 0 : i32
    %c0_i32_1 = arith.constant 0 : i32
    return %c0_i32, %c0_i32_0 : i32, i32
  }
  func.func @transform_4(%arg0: i32) -> (i32, i32) {
    %c0_i32 = arith.constant 0 : i32
    %c0_i32_0 = arith.constant 0 : i32
    %c0_i32_1 = arith.constant 0 : i32
    return %c0_i32, %c0_i32_0 : i32, i32
  }
  func.func @transform_5(%arg0: i32) -> (i32, i32) {
    %c0_i32 = arith.constant 0 : i32
    %c0_i32_0 = arith.constant 0 : i32
    %c0_i32_1 = arith.constant 0 : i32
    return %c0_i32, %c0_i32_0 : i32, i32
  }
  func.func @transform_6(%arg0: i32) -> (i32, i32) {
    %c0_i32 = arith.constant 0 : i32
    %c0_i32_0 = arith.constant 0 : i32
    %c0_i32_1 = arith.constant 0 : i32
    return %c0_i32, %c0_i32_0 : i32, i32
  }
  func.func @transform_7(%arg0: i32) -> i32 {
    %c0_i32 = arith.constant 0 : i32
    %c0_i32_0 = arith.constant 0 : i32
    return %c0_i32 : i32
  }
  func.func @transform_8(%arg0: i32) -> (i32, i32) {
    %c0_i32 = arith.constant 0 : i32
    %c0_i32_0 = arith.constant 0 : i32
    %c0_i32_1 = arith.constant 0 : i32
    return %c0_i32, %c0_i32_0 : i32, i32
  }
  func.func @transform_9(%arg0: i32) -> (i32, i32) {
    %c0_i32 = arith.constant 0 : i32
    %c0_i32_0 = arith.constant 0 : i32
    %c0_i32_1 = arith.constant 0 : i32
    return %c0_i32, %c0_i32_0 : i32, i32
  }
  func.func @transform_10(%arg0: i32) -> (i32, i32, i32) {
    %c0_i32 = arith.constant 0 : i32
    %c0_i32_0 = arith.constant 0 : i32
    %c0_i32_1 = arith.constant 0 : i32
    return %arg0, %c0_i32, %c0_i32_0 : i32, i32, i32
  }
}

</mosaic_0001>

<llo_original>
// kernel: temporal_block_forward.1
$region0: #{temporal_block_forward.1}
  #allocation0 [shape = 'u32[]', space=smem, size = 0x4, offset = 0x4, fixed_abs, tag = 'smem constant byte address 0x4 - core index']
  #allocation1 [shape = 'u32[144,128]{1,0:T(1,128)}', space=vmem, size = 0x12000, scoped, tag = 'internal scratch']
  #allocation2 [shape = 'f32[24,128]{1,0:T(8,128)}', space=vmem, size = 0x3000, scoped, tag = 'scratch operand']
  #allocation3 [shape = 'f32[16,384]{1,0:T(8,128)}', space=vmem, size = 0x6000, scoped, tag = 'scratch operand']
  #allocation4 [shape = 'f32[24,128]{1,0:T(8,128)}', space=vmem, size = 0x3000, scoped, tag = 'scratch operand']
  %s0 = inlined_call_operand.vmem [shape: f32[2,16,128], index: 0, kind: input, shape index: {}]
  %s1 = inlined_call_operand.vmem [shape: bf16[384,128], index: 1, kind: input, shape index: {}]
  %s2 = inlined_call_operand.vmem [shape: f32[1,128], index: 2, kind: input, shape index: {}]
  %s3 = inlined_call_operand.vmem [shape: bf16[128,384], index: 3, kind: input, shape index: {}]
  %s4 = inlined_call_operand.vmem [shape: f32[1,384], index: 4, kind: input, shape index: {}]
  %s5 = inlined_call_operand.vmem [shape: bf16[128,128], index: 5, kind: input, shape index: {}]
  %s6 = inlined_call_operand.vmem [shape: f32[1,128], index: 6, kind: input, shape index: {}]
  %s7 = inlined_call_operand.vmem [shape: f32[5], index: 7, kind: input, shape index: {}]
  %s8 = inlined_call_operand.vmem [shape: bf16[128,128], index: 8, kind: input, shape index: {}]
  %s9 = inlined_call_operand.vmem [shape: f32[1,128], index: 9, kind: input, shape index: {}]
  %s10 = inlined_call_operand.hbm [shape: f32[2,16,128], index: 10, kind: output, shape index: {}]
  %s11 = sld [smem:[#allocation0]]
  $region77: #{temporal_block_forward.1} parent=0
    _
  %s13 = ssub.s32 1, %s11
  %s14 = scalar_select 0, %s13, %s11
  $region1: #{temporal_block_forward.1} parent=0
    #allocation5 [shape = 'u8[512]{0}', space=smem, size = 0x200, scoped, tag = 'input window, operand 7, single buffered']
    #allocation6 [shape = 's32[2]{0}', space=sflag, size = 0x8, scoped, tag = 'scoped memory for temporal_block_forward.1']
    #allocation7 [shape = 's32[2]{0}', space=sflag, size = 0x8, scoped, tag = 'scoped memory for temporal_block_forward.1']
    #allocation8 [shape = 'u8[16384]{0}', space=vmem, size = 0x4000, scoped, tag = 'output window, operand 0']
    %15 = vsyncpa [#allocation7], 0
    %16 = vsyncpa [#allocation6], 0
    %s17 = scalar_lea.sflag [#allocation6], 1
    %18 = vsyncpa %s17, 0
    loop: start=0, step=1, limit=4
    $region2: #{temporal_block_forward.1} parent=1 // loop_pre_header
      _
    $region3: #{temporal_block_forward.1} parent=1 // loop_header
      %s20 = sphi 0, %s24
      %p21 = scmp.ge.s32.totalorder %s20, 4
      %s30 = sphi 0, %s32
      %s33 = sphi 0, %s30
      %s34 = sphi 0, %s33
      %s50 = sphi 0, %s34
      %s54 = sphi 0, %s54
      %s56 = sphi 0, %s54
      %s57 = sphi 0, %s56
      %s71 = sphi 0, %s57
      %s75 = sphi 0, %s75
      %s77 = sphi 0, %s75
      %s78 = sphi 0, %s77
      %s92 = sphi 0, %s78
      %s96 = sphi 0, %s96
      %s98 = sphi 0, %s96
      %s99 = sphi 0, %s98
      %s113 = sphi 0, %s99
      %s117 = sphi 0, %s117
      %s119 = sphi 0, %s117
      %s120 = sphi 0, %s119
      %s134 = sphi 0, %s120
      %s138 = sphi 0, %s138
      %s140 = sphi 0, %s138
      %s141 = sphi 0, %s140
      %s155 = sphi 0, %s141
      %s159 = sphi 0, %s159
      %s161 = sphi 0, %s159
      %s162 = sphi 0, %s161
      %s176 = sphi 0, %s162
      %s180 = sphi 0, %s180
      %s182 = sphi 0, %s180
      %s183 = sphi 0, %s182
      %s197 = sphi 0, %s183
      %s201 = sphi 0, %s201
      %s203 = sphi 0, %s201
      %s204 = sphi 0, %s203
      %s218 = sphi 0, %s204
      %s222 = sphi 0, %s222
      %s224 = sphi 0, %s222
      %s225 = sphi 0, %s224
      %s239 = sphi 0, %s225
      %s245 = sphi 0, %s247
      %s248 = sphi 0, %s245
      %s249 = sphi 0, %s248
      %s265 = sphi 0, %s249
    $region4: #{temporal_block_forward.1} parent=1 // loop_header_branch
      %23 = sbr.rel (%p21) target = $region8
    $region5: #{temporal_block_forward.1} parent=1 // loop_body
      %s25 = ssub.s32 %s20, 1
      %s26 = ssub.s32 %s20, 2
      %s27 = sadd.s32 %s20, 1
      %s28 = ssub.s32 %s20, %s27
      %p29 = scmp.eq.s32.totalorder %s28, 0
      %s31 = sadd.s32 %s30, 1
      %s32 = scalar_select %p29, %s30, %s31
      %p35 = pneg %p29
      %p36 = scmp.eq.s32.totalorder %s20, 1
      %p37 = por %p35, %p36
      %p38 = scmp.ne.s32.totalorder %s30, %s33
      %p39 = scmp.eq.s32.totalorder %s20, 0
      %p40 = por %p38, %p39
      %p41 = scmp.ne.s32.totalorder %s30, %s33
      %p42 = scmp.eq.s32.totalorder %s25, 1
      %p43 = por %p41, %p42
      %p44 = scmp.ne.s32.totalorder %s33, %s34
      %p45 = scmp.eq.s32.totalorder %s25, 0
      %p46 = por %p44, %p45
      %p47 = scmp.ne.s32.totalorder %s33, %s34
      %p48 = scmp.eq.s32.totalorder %s26, 1
      %p49 = por %p47, %p48
      %p51 = scmp.ne.s32.totalorder %s34, %s50
      %p52 = scmp.eq.s32.totalorder %s26, 0
      %p53 = por %p51, %p52
      %s55 = sadd.s32 %s54, 1
      %p58 = scmp.eq.s32.totalorder %s20, 1
      %p59 = scmp.ne.s32.totalorder %s54, %s56
      %p60 = scmp.eq.s32.totalorder %s20, 0
      %p61 = por %p59, %p60
      %p62 = scmp.ne.s32.totalorder %s54, %s56
      %p63 = scmp.eq.s32.totalorder %s25, 1
      %p64 = por %p62, %p63
      %p65 = scmp.ne.s32.totalorder %s56, %s57
      %p66 = scmp.eq.s32.totalorder %s25, 0
      %p67 = por %p65, %p66
      %p68 = scmp.ne.s32.totalorder %s56, %s57
      %p69 = scmp.eq.s32.totalorder %s26, 1
      %p70 = por %p68, %p69
      %p72 = scmp.ne.s32.totalorder %s57, %s71
      %p73 = scmp.eq.s32.totalorder %s26, 0
      %p74 = por %p72, %p73
      %s76 = sadd.s32 %s75, 1
      %p79 = scmp.eq.s32.totalorder %s20, 1
      %p80 = scmp.ne.s32.totalorder %s75, %s77
      %p81 = scmp.eq.s32.totalorder %s20, 0
      %p82 = por %p80, %p81
      %p83 = scmp.ne.s32.totalorder %s75, %s77
      %p84 = scmp.eq.s32.totalorder %s25, 1
      %p85 = por %p83, %p84
      %p86 = scmp.ne.s32.totalorder %s77, %s78
      %p87 = scmp.eq.s32.totalorder %s25, 0
      %p88 = por %p86, %p87
      %p89 = scmp.ne.s32.totalorder %s77, %s78
      %p90 = scmp.eq.s32.totalorder %s26, 1
      %p91 = por %p89, %p90
      %p93 = scmp.ne.s32.totalorder %s78, %s92
      %p94 = scmp.eq.s32.totalorder %s26, 0
      %p95 = por %p93, %p94
      %s97 = sadd.s32 %s96, 1
      %p100 = scmp.eq.s32.totalorder %s20, 1
      %p101 = scmp.ne.s32.totalorder %s96, %s98
      %p102 = scmp.eq.s32.totalorder %s20, 0
      %p103 = por %p101, %p102
      %p104 = scmp.ne.s32.totalorder %s96, %s98
      %p105 = scmp.eq.s32.totalorder %s25, 1
      %p106 = por %p104, %p105
      %p107 = scmp.ne.s32.totalorder %s98, %s99
      %p108 = scmp.eq.s32.totalorder %s25, 0
      %p109 = por %p107, %p108
      %p110 = scmp.ne.s32.totalorder %s98, %s99
      %p111 = scmp.eq.s32.totalorder %s26, 1
      %p112 = por %p110, %p111
      %p114 = scmp.ne.s32.totalorder %s99, %s113
      %p115 = scmp.eq.s32.totalorder %s26, 0
      %p116 = por %p114, %p115
      %s118 = sadd.s32 %s117, 1
      %p121 = scmp.eq.s32.totalorder %s20, 1
      %p122 = scmp.ne.s32.totalorder %s117, %s119
      %p123 = scmp.eq.s32.totalorder %s20, 0
      %p124 = por %p122, %p123
      %p125 = scmp.ne.s32.totalorder %s117, %s119
      %p126 = scmp.eq.s32.totalorder %s25, 1
      %p127 = por %p125, %p126
      %p128 = scmp.ne.s32.totalorder %s119, %s120
      %p129 = scmp.eq.s32.totalorder %s25, 0
      %p130 = por %p128, %p129
      %p131 = scmp.ne.s32.totalorder %s119, %s120
      %p132 = scmp.eq.s32.totalorder %s26, 1
      %p133 = por %p131, %p132
      %p135 = scmp.ne.s32.totalorder %s120, %s134
      %p136 = scmp.eq.s32.totalorder %s26, 0
      %p137 = por %p135, %p136
      %s139 = sadd.s32 %s138, 1
      %p142 = scmp.eq.s32.totalorder %s20, 1
      %p143 = scmp.ne.s32.totalorder %s138, %s140
      %p144 = scmp.eq.s32.totalorder %s20, 0
      %p145 = por %p143, %p144
      %p146 = scmp.ne.s32.totalorder %s138, %s140
      %p147 = scmp.eq.s32.totalorder %s25, 1
      %p148 = por %p146, %p147
      %p149 = scmp.ne.s32.totalorder %s140, %s141
      %p150 = scmp.eq.s32.totalorder %s25, 0
      %p151 = por %p149, %p150
      %p152 = scmp.ne.s32.totalorder %s140, %s141
      %p153 = scmp.eq.s32.totalorder %s26, 1
      %p154 = por %p152, %p153
      %p156 = scmp.ne.s32.totalorder %s141, %s155
      %p157 = scmp.eq.s32.totalorder %s26, 0
      %p158 = por %p156, %p157
      %s160 = sadd.s32 %s159, 1
      %p163 = scmp.eq.s32.totalorder %s20, 1
      %p164 = scmp.ne.s32.totalorder %s159, %s161
      %p165 = scmp.eq.s32.totalorder %s20, 0
      %p166 = por %p164, %p165
      %p167 = scmp.ne.s32.totalorder %s159, %s161
      %p168 = scmp.eq.s32.totalorder %s25, 1
      %p169 = por %p167, %p168
      %p170 = scmp.ne.s32.totalorder %s161, %s162
      %p171 = scmp.eq.s32.totalorder %s25, 0
      %p172 = por %p170, %p171
      %p173 = scmp.ne.s32.totalorder %s161, %s162
      %p174 = scmp.eq.s32.totalorder %s26, 1
      %p175 = por %p173, %p174
      %p177 = scmp.ne.s32.totalorder %s162, %s176
      %p178 = scmp.eq.s32.totalorder %s26, 0
      %p179 = por %p177, %p178
      %s181 = sadd.s32 %s180, 1
      %p184 = scmp.eq.s32.totalorder %s20, 1
      %p185 = scmp.ne.s32.totalorder %s180, %s182
      %p186 = scmp.eq.s32.totalorder %s20, 0
      %p187 = por %p185, %p186
      %p188 = scmp.ne.s32.totalorder %s180, %s182
      %p189 = scmp.eq.s32.totalorder %s25, 1
      %p190 = por %p188, %p189
      %p191 = scmp.ne.s32.totalorder %s182, %s183
      %p192 = scmp.eq.s32.totalorder %s25, 0
      %p193 = por %p191, %p192
      %p194 = scmp.ne.s32.totalorder %s182, %s183
      %p195 = scmp.eq.s32.totalorder %s26, 1
      %p196 = por %p194, %p195
      %p198 = scmp.ne.s32.totalorder %s183, %s197
      %p199 = scmp.eq.s32.totalorder %s26, 0
      %p200 = por %p198, %p199
      %s202 = sadd.s32 %s201, 1
      %p205 = scmp.eq.s32.totalorder %s20, 1
      %p206 = scmp.ne.s32.totalorder %s201, %s203
      %p207 = scmp.eq.s32.totalorder %s20, 0
      %p208 = por %p206, %p207
      %p209 = scmp.ne.s32.totalorder %s201, %s203
      %p210 = scmp.eq.s32.totalorder %s25, 1
      %p211 = por %p209, %p210
      %p212 = scmp.ne.s32.totalorder %s203, %s204
      %p213 = scmp.eq.s32.totalorder %s25, 0
      %p214 = por %p212, %p213
      %p215 = scmp.ne.s32.totalorder %s203, %s204
      %p216 = scmp.eq.s32.totalorder %s26, 1
      %p217 = por %p215, %p216
      %p219 = scmp.ne.s32.totalorder %s204, %s218
      %p220 = scmp.eq.s32.totalorder %s26, 0
      %p221 = por %p219, %p220
      %s223 = sadd.s32 %s222, 1
      %p226 = scmp.eq.s32.totalorder %s20, 1
      %p227 = scmp.ne.s32.totalorder %s222, %s224
      %p228 = scmp.eq.s32.totalorder %s20, 0
      %p229 = por %p227, %p228
      %p230 = scmp.ne.s32.totalorder %s222, %s224
      %p231 = scmp.eq.s32.totalorder %s25, 1
      %p232 = por %p230, %p231
      %p233 = scmp.ne.s32.totalorder %s224, %s225
      %p234 = scmp.eq.s32.totalorder %s25, 0
      %p235 = por %p233, %p234
      %p236 = scmp.ne.s32.totalorder %s224, %s225
      %p237 = scmp.eq.s32.totalorder %s26, 1
      %p238 = por %p236, %p237
      %p240 = scmp.ne.s32.totalorder %s225, %s239
      %p241 = scmp.eq.s32.totalorder %s26, 0
      %p242 = por %p240, %p241
      %s243 = ssub.s32 %s20, %s27
      %p244 = scmp.eq.s32.totalorder %s243, 0
      %s246 = sadd.s32 %s245, 1
      %s247 = scalar_select %p244, %s245, %s246
      %p250 = pneg %p244
      %p251 = scmp.eq.s32.totalorder %s20, 1
      %p252 = por %p250, %p251
      %p253 = scmp.ne.s32.totalorder %s245, %s248
      %p254 = scmp.eq.s32.totalorder %s20, 0
      %p255 = por %p253, %p254
      %p256 = scmp.ne.s32.totalorder %s245, %s248
      %p257 = scmp.eq.s32.totalorder %s25, 1
      %p258 = por %p256, %p257
      %p259 = scmp.ne.s32.totalorder %s248, %s249
      %p260 = scmp.eq.s32.totalorder %s25, 0
      %p261 = por %p259, %p260
      %p262 = scmp.ne.s32.totalorder %s248, %s249
      %p263 = scmp.eq.s32.totalorder %s26, 1
      %p264 = por %p262, %p263
      %p266 = scmp.ne.s32.totalorder %s249, %s265
      %p267 = scmp.eq.s32.totalorder %s26, 0
      %p268 = por %p266, %p267
      %p269 = scmp.le.s32.totalorder 1, %s20
      %p270 = scmp.lt.s32.totalorder %s20, 3
      %p271 = pnand %p269, %p270
      %p272 = pneg %p271
      // Predicated region
      $region9: #{temporal_block_forward.1} parent=5 // pred_check
        _
      $region10: #{temporal_block_forward.1} parent=5 // pred_check_branch
        %274 = sbr.rel (%p271) target = $region12
      $region11: #{temporal_block_forward.1} parent=5 // pred_region
        %s275 = ssub.s32 %s20, 1
        // Predicated region
        $region13: #{temporal_block_forward.1} parent=11 // pred_check
          %p276 = pneg %p67
        $region14: #{temporal_block_forward.1} parent=11 // pred_check_branch
          %278 = sbr.rel (%p276) target = $region16
        $region15: #{temporal_block_forward.1} parent=11 // pred_region
          _
        $region16: #{temporal_block_forward.1} parent=11 // pred_fallthru
          _
        // Predicated region
        $region17: #{temporal_block_forward.1} parent=11 // pred_check
          %p279 = pneg %p88
        $region18: #{temporal_block_forward.1} parent=11 // pred_check_branch
          %281 = sbr.rel (%p279) target = $region20
        $region19: #{temporal_block_forward.1} parent=11 // pred_region
          _
        $region20: #{temporal_block_forward.1} parent=11 // pred_fallthru
          _
        // Predicated region
        $region21: #{temporal_block_forward.1} parent=11 // pred_check
          %p282 = pneg %p109
        $region22: #{temporal_block_forward.1} parent=11 // pred_check_branch
          %284 = sbr.rel (%p282) target = $region24
        $region23: #{temporal_block_forward.1} parent=11 // pred_region
          _
        $region24: #{temporal_block_forward.1} parent=11 // pred_fallthru
          _
        // Predicated region
        $region25: #{temporal_block_forward.1} parent=11 // pred_check
          %p285 = pneg %p130
        $region26: #{temporal_block_forward.1} parent=11 // pred_check_branch
          %287 = sbr.rel (%p285) target = $region28
        $region27: #{temporal_block_forward.1} parent=11 // pred_region
          _
        $region28: #{temporal_block_forward.1} parent=11 // pred_fallthru
          _
        // Predicated region
        $region29: #{temporal_block_forward.1} parent=11 // pred_check
          %p288 = pneg %p151
        $region30: #{temporal_block_forward.1} parent=11 // pred_check_branch
          %290 = sbr.rel (%p288) target = $region32
        $region31: #{temporal_block_forward.1} parent=11 // pred_region
          _
        $region32: #{temporal_block_forward.1} parent=11 // pred_fallthru
          _
        // Predicated region
        $region33: #{temporal_block_forward.1} parent=11 // pred_check
          %p291 = pneg %p172
        $region34: #{temporal_block_forward.1} parent=11 // pred_check_branch
          %293 = sbr.rel (%p291) target = $region36
        $region35: #{temporal_block_forward.1} parent=11 // pred_region
          _
        $region36: #{temporal_block_forward.1} parent=11 // pred_fallthru
          _
        // Predicated region
        $region37: #{temporal_block_forward.1} parent=11 // pred_check
          %p294 = pneg %p193
        $region38: #{temporal_block_forward.1} parent=11 // pred_check_branch
          %296 = sbr.rel (%p294) target = $region40
        $region39: #{temporal_block_forward.1} parent=11 // pred_region
          %s298 = ssub.s32 16, 16
          %299 = vsyncadd [#allocation7], %s298
          %s301 = sshll.u32 %s7, 4
          %s302 = int_to_ptr.vmem [resolvable:$true] %s301
          %304 = dma.vmem_to_smem %s302, 16, [#allocation5], [#allocation7]
        $region40: #{temporal_block_forward.1} parent=11 // pred_fallthru
          _
        // Predicated region
        $region41: #{temporal_block_forward.1} parent=11 // pred_check
          %p305 = pneg %p214
        $region42: #{temporal_block_forward.1} parent=11 // pred_check_branch
          %307 = sbr.rel (%p305) target = $region44
        $region43: #{temporal_block_forward.1} parent=11 // pred_region
          _
        $region44: #{temporal_block_forward.1} parent=11 // pred_fallthru
          _
        // Predicated region
        $region45: #{temporal_block_forward.1} parent=11 // pred_check
          %p308 = pneg %p235
        $region46: #{temporal_block_forward.1} parent=11 // pred_check_branch
          %310 = sbr.rel (%p308) target = $region48
        $region47: #{temporal_block_forward.1} parent=11 // pred_region
          _
        $region48: #{temporal_block_forward.1} parent=11 // pred_fallthru
          _
      $region12: #{temporal_block_forward.1} parent=5 // pred_fallthru
        _
      %p311 = scmp.lt.s32.totalorder %s20, 2
      // Predicated region
      $region49: #{temporal_block_forward.1} parent=5 // pred_check
        %p312 = pneg %p311
      $region50: #{temporal_block_forward.1} parent=5 // pred_check_branch
        %314 = sbr.rel (%p312) target = $region52
      $region51: #{temporal_block_forward.1} parent=5 // pred_region
        // Predicated region
        $region53: #{temporal_block_forward.1} parent=51 // pred_check
          %p315 = pneg %p40
        $region54: #{temporal_block_forward.1} parent=51 // pred_check_branch
          %317 = sbr.rel (%p315) target = $region56
        $region55: #{temporal_block_forward.1} parent=51 // pred_region
          %p318 = scmp.lt.s32.totalorder %s20, 1
          %s319 = scalar_select %p318, %s20, 1
          %s320 = smul.addr %s319, 2
          %s321 = smul.addr %s320, 8
          %s322 = scalar_lea.vmem %s0, %s321
        $region56: #{temporal_block_forward.1} parent=51 // pred_fallthru
          _
      $region52: #{temporal_block_forward.1} parent=5 // pred_fallthru
        _
      %p323 = scmp.le.s32.totalorder 1, %s20
      %p324 = scmp.lt.s32.totalorder %s20, 3
      %p325 = pnand %p323, %p324
      %p326 = pneg %p325
      // Predicated region
      $region57: #{temporal_block_forward.1} parent=5 // pred_check
        _
      $region58: #{temporal_block_forward.1} parent=5 // pred_check_branch
        %328 = sbr.rel (%p325) target = $region60
      $region59: #{temporal_block_forward.1} parent=5 // pred_region
        %s329 = ssub.s32 %s20, 1
        // Predicated region
        $region61: #{temporal_block_forward.1} parent=59 // pred_check
          %p330 = pneg %p193
        $region62: #{temporal_block_forward.1} parent=59 // pred_check_branch
          %332 = sbr.rel (%p330) target = $region64
        $region63: #{temporal_block_forward.1} parent=59 // pred_region
          %333 = dma.done [#allocation7], 16
        $region64: #{temporal_block_forward.1} parent=59 // pred_fallthru
          _
        %334 = sfence
        %p335 = scmp.lt.s32.totalorder %s25, 1
        %s336 = scalar_select %p335, %s25, 1
        %s337 = smul.addr %s336, 2
        %s338 = smul.addr %s337, 8
        %s339 = scalar_lea.vmem %s0, %s338
        %p340 = pneg %p46
        %p341 = pneg %p43
        %p342 = pneg %p67
        %p343 = pneg %p64
        %p344 = pneg %p88
        %p345 = pneg %p85
        %p346 = pneg %p109
        %p347 = pneg %p106
        %p348 = pneg %p130
        %p349 = pneg %p127
        %p350 = pneg %p151
        %p351 = pneg %p148
        %p352 = pneg %p172
        %p353 = pneg %p169
        %p354 = pneg %p193
        %p355 = pneg %p190
        %p356 = pneg %p214
        %p357 = pneg %p211
        %p358 = pneg %p235
        %p359 = pneg %p232
        %p360 = pneg %p261
        %p361 = pneg %p258
        %s362 = sand.u32 %s248, 1
        %s363 = scalar_lea.sflag [#allocation6], %s362
        %s364 = sand.u32 %s248, 1
        %s365 = smul.addr %s364, 16
        %s366 = scalar_lea.vmem [#allocation8], %s365
        %p367 = scmp.lt.s32.totalorder %s25, 1
        %s368 = scalar_select %p367, %s25, 1
        %s369 = smul.addr %s368, 2
        %s370 = smul.addr %s369, 8
        %s371 = scalar_lea.vmem %s0, %s370
        %v373 = vld [vmem:[%s371] sm:$0xff]
        %v374 = vld [vmem:[%s371 + $0x8] sm:$0xff]
        %375 = vst [vmem:[#allocation2] sm:$0xff] 0.0
        %376 = vst [vmem:[#allocation2 + $0x8] sm:$0xff] %v373
        %377 = vst [vmem:[#allocation2 + $0x10] sm:$0xff] %v374
        %v378 = vld [vmem:[#allocation2] sm:$0xff]
        %v379 = vld [vmem:[#allocation2 + $0x8] sm:$0xff]
        %v380 = vld [vmem:[#allocation2 + $0x10] sm:$0xff]
        %vm384 = vcmask 1041408
        %v385 = vrot.slane %v378, 6
        %v386 = vrot.slane %v379, 6
        %v387 = vsel %vm384, %v385, %v386
        %v388 = vrot.slane %v380, 6
        %v389 = vsel %vm384, %v386, %v388
        %392 = vst [vmem:[#allocation3] sm:$0xff] %v387
        %393 = vst [vmem:[#allocation3 + $0x18] sm:$0xff] %v389
        %vm394 = vcmask 1040384
        %v395 = vrot.slane %v378, 7
        %v396 = vrot.slane %v379, 7
        %v397 = vsel %vm394, %v395, %v396
        %v398 = vrot.slane %v380, 7
        %v399 = vsel %vm394, %v396, %v398
        %402 = vst [vmem:[#allocation3 + $0x8] sm:$0xff] %v397
        %403 = vst [vmem:[#allocation3 + $0x20] sm:$0xff] %v399
        %404 = vst [vmem:[#allocation3 + $0x10] sm:$0xff] %v379
        %405 = vst [vmem:[#allocation3 + $0x28] sm:$0xff] %v380
        %v406 = vld [vmem:[#allocation3] sm:$0xff]
        %v407 = vld [vmem:[#allocation3 + $0x8] sm:$0xff]
        %v408 = vld [vmem:[#allocation3 + $0x10] sm:$0xff]
        %v409 = vld [vmem:[#allocation3 + $0x18] sm:$0xff]
        %v410 = vld [vmem:[#allocation3 + $0x20] sm:$0xff]
        %v411 = vld [vmem:[#allocation3 + $0x28] sm:$0xff]
        %v412 = vpack.c.bf16 %v409, %v406
        %v413 = vpack.c.bf16 %v410, %v407
        %v414 = vpack.c.bf16 %v411, %v408
        %v415 = vld [vmem:[%s1] sm:$0xf]
        %v416 = vld [vmem:[%s1 + $0x4] sm:$0xf]
        %v417 = vld [vmem:[%s1 + $0x8] sm:$0xf]
        %v418 = vld [vmem:[%s1 + $0xc] sm:$0xf]
        %v419 = vld [vmem:[%s1 + $0x10] sm:$0xf]
        %v420 = vld [vmem:[%s1 + $0x14] sm:$0xf]
        %v421 = vld [vmem:[%s1 + $0x18] sm:$0xf]
        %v422 = vld [vmem:[%s1 + $0x1c] sm:$0xf]
        %v423 = vld [vmem:[%s1 + $0x20] sm:$0xf]
        %v424 = vld [vmem:[%s1 + $0x24] sm:$0xf]
        %v425 = vld [vmem:[%s1 + $0x28] sm:$0xf]
        %v426 = vld [vmem:[%s1 + $0x2c] sm:$0xf]
        %v427 = vld [vmem:[%s1 + $0x30] sm:$0xf]
        %v428 = vld [vmem:[%s1 + $0x34] sm:$0xf]
        %v429 = vld [vmem:[%s1 + $0x38] sm:$0xf]
        %v430 = vld [vmem:[%s1 + $0x3c] sm:$0xf]
        %v431 = vld [vmem:[%s1 + $0x40] sm:$0xf]
        %v432 = vld [vmem:[%s1 + $0x44] sm:$0xf]
        %v433 = vld [vmem:[%s1 + $0x48] sm:$0xf]
        %v434 = vld [vmem:[%s1 + $0x4c] sm:$0xf]
        %v435 = vld [vmem:[%s1 + $0x50] sm:$0xf]
        %v436 = vld [vmem:[%s1 + $0x54] sm:$0xf]
        %v437 = vld [vmem:[%s1 + $0x58] sm:$0xf]
        %v438 = vld [vmem:[%s1 + $0x5c] sm:$0xf]
        %v439 = vld [vmem:[%s1 + $0x60] sm:$0xf]
        %v440 = vld [vmem:[%s1 + $0x64] sm:$0xf]
        %v441 = vld [vmem:[%s1 + $0x68] sm:$0xf]
        %v442 = vld [vmem:[%s1 + $0x6c] sm:$0xf]
        %v443 = vld [vmem:[%s1 + $0x70] sm:$0xf]
        %v444 = vld [vmem:[%s1 + $0x74] sm:$0xf]
        %v445 = vld [vmem:[%s1 + $0x78] sm:$0xf]
        %v446 = vld [vmem:[%s1 + $0x7c] sm:$0xf]
        %v447 = vld [vmem:[%s1 + $0x80] sm:$0xf]
        %v448 = vld [vmem:[%s1 + $0x84] sm:$0xf]
        %v449 = vld [vmem:[%s1 + $0x88] sm:$0xf]
        %v450 = vld [vmem:[%s1 + $0x8c] sm:$0xf]
        %v451 = vld [vmem:[%s1 + $0x90] sm:$0xf]
        %v452 = vld [vmem:[%s1 + $0x94] sm:$0xf]
        %v453 = vld [vmem:[%s1 + $0x98] sm:$0xf]
        %v454 = vld [vmem:[%s1 + $0x9c] sm:$0xf]
        %v455 = vld [vmem:[%s1 + $0xa0] sm:$0xf]
        %v456 = vld [vmem:[%s1 + $0xa4] sm:$0xf]
        %v457 = vld [vmem:[%s1 + $0xa8] sm:$0xf]
        %v458 = vld [vmem:[%s1 + $0xac] sm:$0xf]
        %v459 = vld [vmem:[%s1 + $0xb0] sm:$0xf]
        %v460 = vld [vmem:[%s1 + $0xb4] sm:$0xf]
        %v461 = vld [vmem:[%s1 + $0xb8] sm:$0xf]
        %v462 = vld [vmem:[%s1 + $0xbc] sm:$0xf]
        %v463 = vld [vmem:[%s2] sm:$0x1]
        %v465 = vlaneseq
        %v466 = vshrl.u32 %v465, 7
        %v467 = vsub.s32 0, %v466
        %v468 = vrot.slane %v463, %v467
        %v518 = vunpack.c.l.b16 %v415
        %v519 = vunpack.c.l.b16 %v416
        %v520 = vunpack.c.l.b16 %v417
        %v521 = vunpack.c.l.b16 %v418
        %v522 = vunpack.c.l.b16 %v419
        %v523 = vunpack.c.l.b16 %v420
        %v524 = vunpack.c.l.b16 %v421
        %v525 = vunpack.c.l.b16 %v422
        %v526 = vunpack.c.l.b16 %v423
        %v527 = vunpack.c.l.b16 %v424
        %v528 = vunpack.c.l.b16 %v425
        %v529 = vunpack.c.l.b16 %v426
        %v530 = vunpack.c.l.b16 %v427
        %v531 = vunpack.c.l.b16 %v428
        %v532 = vunpack.c.l.b16 %v429
        %v533 = vunpack.c.l.b16 %v430
        %v534 = vunpack.c.l.b16 %v431
        %v535 = vunpack.c.l.b16 %v432
        %v536 = vunpack.c.l.b16 %v433
        %v537 = vunpack.c.l.b16 %v434
        %v538 = vunpack.c.l.b16 %v435
        %v539 = vunpack.c.l.b16 %v436
        %v540 = vunpack.c.l.b16 %v437
        %v541 = vunpack.c.l.b16 %v438
        %v542 = vunpack.c.l.b16 %v439
        %v543 = vunpack.c.l.b16 %v440
        %v544 = vunpack.c.l.b16 %v441
        %v545 = vunpack.c.l.b16 %v442
        %v546 = vunpack.c.l.b16 %v443
        %v547 = vunpack.c.l.b16 %v444
        %v548 = vunpack.c.l.b16 %v445
        %v549 = vunpack.c.l.b16 %v446
        %v550 = vunpack.c.l.b16 %v447
        %v551 = vunpack.c.l.b16 %v448
        %v552 = vunpack.c.l.b16 %v449
        %v553 = vunpack.c.l.b16 %v450
        %v554 = vunpack.c.l.b16 %v451
        %v555 = vunpack.c.l.b16 %v452
        %v556 = vunpack.c.l.b16 %v453
        %v557 = vunpack.c.l.b16 %v454
        %v558 = vunpack.c.l.b16 %v455
        %v559 = vunpack.c.l.b16 %v456
        %v560 = vunpack.c.l.b16 %v457
        %v561 = vunpack.c.l.b16 %v458
        %v562 = vunpack.c.l.b16 %v459
        %v563 = vunpack.c.l.b16 %v460
        %v564 = vunpack.c.l.b16 %v461
        %v565 = vunpack.c.l.b16 %v462
        %v566 = vpack.c.b16 %v519, %v518
        %v567 = vpack.c.b16 %v521, %v520
        %v568 = vpack.c.b16 %v523, %v522
        %v569 = vpack.c.b16 %v525, %v524
        %v570 = vpack.c.b16 %v527, %v526
        %v571 = vpack.c.b16 %v529, %v528
        %v572 = vpack.c.b16 %v531, %v530
        %v573 = vpack.c.b16 %v533, %v532
        %v574 = vpack.c.b16 %v535, %v534
        %v575 = vpack.c.b16 %v537, %v536
        %v576 = vpack.c.b16 %v539, %v538
        %v577 = vpack.c.b16 %v541, %v540
        %v578 = vpack.c.b16 %v543, %v542
        %v579 = vpack.c.b16 %v545, %v544
        %v580 = vpack.c.b16 %v547, %v546
        %v581 = vpack.c.b16 %v549, %v548
        %v582 = vpack.c.b16 %v551, %v550
        %v583 = vpack.c.b16 %v553, %v552
        %v584 = vpack.c.b16 %v555, %v554
        %v585 = vpack.c.b16 %v557, %v556
        %v586 = vpack.c.b16 %v559, %v558
        %v587 = vpack.c.b16 %v561, %v560
        %v588 = vpack.c.b16 %v563, %v562
        %v589 = vpack.c.b16 %v565, %v564
        %614 = vmatprep.subr.bf16.mxu0 0
        %615 = vmatpush1.bf16.msra.mxu0 %v573
        %616 = vmatprep.subr.bf16.mxu0 0
        %617 = vmatpush1.bf16.msra.mxu0 %v572
        %618 = vmatprep.subr.bf16.mxu0 0
        %619 = vmatpush1.bf16.msra.mxu0 %v571
        %620 = vmatprep.subr.bf16.mxu0 0
        %621 = vmatpush1.bf16.msra.mxu0 %v570
        %622 = vmatprep.subr.bf16.mxu0 0
        %623 = vmatpush1.bf16.msra.mxu0 %v569
        %624 = vmatprep.subr.bf16.mxu0 0
        %625 = vmatpush1.bf16.msra.mxu0 %v568
        %626 = vmatprep.subr.bf16.mxu0 0
        %627 = vmatpush1.bf16.msra.mxu0 %v567
        %628 = vmatprep.subr.bf16.mxu0 0
        %629 = vmatpush1.bf16.msra.mxu0 %v566
        %630 = vmatprep.subr.bf16.mxu0 0
        %631 = vmatpush2.bf16.msra.mxu0 %v581
        %632 = vmatprep.subr.bf16.mxu0 0
        %633 = vmatpush2.bf16.msra.mxu0 %v580
        %634 = vmatprep.subr.bf16.mxu0 0
        %635 = vmatpush2.bf16.msra.mxu0 %v579
        %636 = vmatprep.subr.bf16.mxu0 0
        %637 = vmatpush2.bf16.msra.mxu0 %v578
        %638 = vmatprep.subr.bf16.mxu0 0
        %639 = vmatpush2.bf16.msra.mxu0 %v577
        %640 = vmatprep.subr.bf16.mxu0 0
        %641 = vmatpush2.bf16.msra.mxu0 %v576
        %642 = vmatprep.subr.bf16.mxu0 0
        %643 = vmatpush2.bf16.msra.mxu0 %v575
        %644 = vmatprep.subr.bf16.mxu0 0
        %645 = vmatpush2.bf16.msra.mxu0 %v574
        %646 = vmatprep.mubr.bf16.mxu0 %v413
        %647 = vmatmul.mubr.bf16.gmra.mxu0 %v412
        %v648 = vpop.f32.mrf.mxu0
        %v649 = vadd.f32 %v468, %v648
        %v650 = vpop.f32.mrf.mxu0
        %v651 = vpop.f32.mrf.mxu0
        %v652 = vadd.f32 %v468, %v651
        %v653 = vpop.f32.mrf.mxu0
        %654 = vdwg.mxu0
        %655 = vmatprep.subr.bf16.mxu0 0
        %656 = vmatpush1.bf16.msra.mxu0 %v589
        %657 = vmatprep.subr.bf16.mxu0 0
        %658 = vmatpush1.bf16.msra.mxu0 %v588
        %659 = vmatprep.subr.bf16.mxu0 0
        %660 = vmatpush1.bf16.msra.mxu0 %v587
        %661 = vmatprep.subr.bf16.mxu0 0
        %662 = vmatpush1.bf16.msra.mxu0 %v586
        %663 = vmatprep.subr.bf16.mxu0 0
        %664 = vmatpush1.bf16.msra.mxu0 %v585
        %665 = vmatprep.subr.bf16.mxu0 0
        %666 = vmatpush1.bf16.msra.mxu0 %v584
        %667 = vmatprep.subr.bf16.mxu0 0
        %668 = vmatpush1.bf16.msra.mxu0 %v583
        %669 = vmatprep.subr.bf16.mxu0 0
        %670 = vmatpush1.bf16.msra.mxu0 %v582
        %671 = vmatprep.subr.bf16.mxu0 0
        %672 = vmatpush2.bf16.msra.mxu0 0
        %673 = vmatprep.subr.bf16.mxu0 0
        %674 = vmatpush2.bf16.msra.mxu0 0
        %675 = vmatprep.subr.bf16.mxu0 0
        %676 = vmatpush2.bf16.msra.mxu0 0
        %677 = vmatprep.subr.bf16.mxu0 0
        %678 = vmatpush2.bf16.msra.mxu0 0
        %679 = vmatprep.subr.bf16.mxu0 0
        %680 = vmatpush2.bf16.msra.mxu0 0
        %681 = vmatprep.subr.bf16.mxu0 0
        %682 = vmatpush2.bf16.msra.mxu0 0
        %683 = vmatprep.subr.bf16.mxu0 0
        %684 = vmatpush2.bf16.msra.mxu0 0
        %685 = vmatprep.subr.bf16.mxu0 0
        %686 = vmatpush2.bf16.msra.mxu0 0
        %687 = vmatprep.mubr.bf16.mxu0 0
        %688 = vmatmul.mubr.bf16.gmra.mxu0 %v414
        %v689 = vpop.f32.mrf.mxu0
        %v690 = vadd.f32 %v649, %v689
        %v691 = vpop.f32.mrf.mxu0
        %v692 = vpop.f32.mrf.mxu0
        %v693 = vadd.f32 %v652, %v692
        %v694 = vpop.f32.mrf.mxu0
        %695 = vdwg.mxu0
        %v696 = vmax.f32 %v690, 0.0
        %v697 = vmax.f32 %v693, 0.0
        %698 = vst [vmem:[#allocation4] sm:$0xff] 0.0
        %699 = vst [vmem:[#allocation4 + $0x8] sm:$0xff] %v696
        %700 = vst [vmem:[#allocation4 + $0x10] sm:$0xff] %v697
        %v701 = vld [vmem:[#allocation4] sm:$0xff]
        %v702 = vld [vmem:[#allocation4 + $0x8] sm:$0xff]
        %v703 = vld [vmem:[#allocation4 + $0x10] sm:$0xff]
        %v704 = vpack.c.bf16 %v702, %v701
        %v705 = vpack.c.bf16 %v703, %v703
        %v706 = vld [vmem:[%s3] sm:$0xff]
        %v707 = vld [vmem:[%s3 + $0x8] sm:$0xf]
        %v708 = vld [vmem:[%s3 + $0xc] sm:$0xff]
        %v709 = vld [vmem:[%s3 + $0x14] sm:$0xf]
        %v710 = vld [vmem:[%s3 + $0x18] sm:$0xff]
        %v711 = vld [vmem:[%s3 + $0x20] sm:$0xf]
        %v712 = vld [vmem:[%s3 + $0x24] sm:$0xff]
        %v713 = vld [vmem:[%s3 + $0x2c] sm:$0xf]
        %v714 = vld [vmem:[%s3 + $0x30] sm:$0xff]
        %v715 = vld [vmem:[%s3 + $0x38] sm:$0xf]
        %v716 = vld [vmem:[%s3 + $0x3c] sm:$0xff]
        %v717 = vld [vmem:[%s3 + $0x44] sm:$0xf]
        %v718 = vld [vmem:[%s3 + $0x48] sm:$0xff]
        %v719 = vld [vmem:[%s3 + $0x50] sm:$0xf]
        %v720 = vld [vmem:[%s3 + $0x54] sm:$0xff]
        %v721 = vld [vmem:[%s3 + $0x5c] sm:$0xf]
        %v722 = vld [vmem:[%s3 + $0x60] sm:$0xff]
        %v723 = vld [vmem:[%s3 + $0x68] sm:$0xf]
        %v724 = vld [vmem:[%s3 + $0x6c] sm:$0xff]
        %v725 = vld [vmem:[%s3 + $0x74] sm:$0xf]
        %v726 = vld [vmem:[%s3 + $0x78] sm:$0xff]
        %v727 = vld [vmem:[%s3 + $0x80] sm:$0xf]
        %v728 = vld [vmem:[%s3 + $0x84] sm:$0xff]
        %v729 = vld [vmem:[%s3 + $0x8c] sm:$0xf]
        %v730 = vld [vmem:[%s3 + $0x90] sm:$0xff]
        %v731 = vld [vmem:[%s3 + $0x98] sm:$0xf]
        %v732 = vld [vmem:[%s3 + $0x9c] sm:$0xff]
        %v733 = vld [vmem:[%s3 + $0xa4] sm:$0xf]
        %v734 = vld [vmem:[%s3 + $0xa8] sm:$0xff]
        %v735 = vld [vmem:[%s3 + $0xb0] sm:$0xf]
        %v736 = vld [vmem:[%s3 + $0xb4] sm:$0xff]
        %v737 = vld [vmem:[%s3 + $0xbc] sm:$0xf]
        %v738 = vld [vmem:[%s4] sm:$0x7]
        %v740 = vlaneseq
        %v741 = vshrl.u32 %v740, 7
        %v742 = vsub.s32 0, %v741
        %v743 = vrot.slane %v738, %v742
        %v744 = vlaneseq
        %v745 = vshrl.u32 %v744, 7
        %v746 = vsub.s32 1, %v745
        %v747 = vrot.slane %v738, %v746
        %v748 = vlaneseq
        %v749 = vshrl.u32 %v748, 7
        %v750 = vsub.s32 2, %v749
        %v751 = vrot.slane %v738, %v750
        %v787 = vunpack.c.l.b16 %v706
        %v788 = vunpack.c.h.b16 %v706
        %v789 = vunpack.c.l.b16 %v707
        %v790 = vunpack.c.l.b16 %v708
        %v791 = vunpack.c.h.b16 %v708
        %v792 = vunpack.c.l.b16 %v709
        %v793 = vunpack.c.l.b16 %v710
        %v794 = vunpack.c.h.b16 %v710
        %v795 = vunpack.c.l.b16 %v711
        %v796 = vunpack.c.l.b16 %v712
        %v797 = vunpack.c.h.b16 %v712
        %v798 = vunpack.c.l.b16 %v713
        %v799 = vunpack.c.l.b16 %v714
        %v800 = vunpack.c.h.b16 %v714
        %v801 = vunpack.c.l.b16 %v715
        %v802 = vunpack.c.l.b16 %v716
        %v803 = vunpack.c.h.b16 %v716
        %v804 = vunpack.c.l.b16 %v717
        %v805 = vunpack.c.l.b16 %v718
        %v806 = vunpack.c.h.b16 %v718
        %v807 = vunpack.c.l.b16 %v719
        %v808 = vunpack.c.l.b16 %v720
        %v809 = vunpack.c.h.b16 %v720
        %v810 = vunpack.c.l.b16 %v721
        %v811 = vunpack.c.l.b16 %v722
        %v812 = vunpack.c.h.b16 %v722
        %v813 = vunpack.c.l.b16 %v723
        %v814 = vunpack.c.l.b16 %v724
        %v815 = vunpack.c.h.b16 %v724
        %v816 = vunpack.c.l.b16 %v725
        %v817 = vunpack.c.l.b16 %v726
        %v818 = vunpack.c.h.b16 %v726
        %v819 = vunpack.c.l.b16 %v727
        %v820 = vunpack.c.l.b16 %v728
        %v821 = vunpack.c.h.b16 %v728
        %v822 = vunpack.c.l.b16 %v729
        %v823 = vunpack.c.l.b16 %v730
        %v824 = vunpack.c.h.b16 %v730
        %v825 = vunpack.c.l.b16 %v731
        %v826 = vunpack.c.l.b16 %v732
        %v827 = vunpack.c.h.b16 %v732
        %v828 = vunpack.c.l.b16 %v733
        %v829 = vunpack.c.l.b16 %v734
        %v830 = vunpack.c.h.b16 %v734
        %v831 = vunpack.c.l.b16 %v735
        %v832 = vunpack.c.l.b16 %v736
        %v833 = vunpack.c.h.b16 %v736
        %v834 = vunpack.c.l.b16 %v737
        %v835 = vpack.c.b16 %v790, %v787
        %v836 = vpack.c.b16 %v791, %v788
        %v837 = vpack.c.b16 %v792, %v789
        %v838 = vpack.c.b16 %v796, %v793
        %v839 = vpack.c.b16 %v797, %v794
        %v840 = vpack.c.b16 %v798, %v795
        %v841 = vpack.c.b16 %v802, %v799
        %v842 = vpack.c.b16 %v803, %v800
        %v843 = vpack.c.b16 %v804, %v801
        %v844 = vpack.c.b16 %v808, %v805
        %v845 = vpack.c.b16 %v809, %v806
        %v846 = vpack.c.b16 %v810, %v807
        %v847 = vpack.c.b16 %v814, %v811
        %v848 = vpack.c.b16 %v815, %v812
        %v849 = vpack.c.b16 %v816, %v813
        %v850 = vpack.c.b16 %v820, %v817
        %v851 = vpack.c.b16 %v821, %v818
        %v852 = vpack.c.b16 %v822, %v819
        %v853 = vpack.c.b16 %v826, %v823
        %v854 = vpack.c.b16 %v827, %v824
        %v855 = vpack.c.b16 %v828, %v825
        %v856 = vpack.c.b16 %v832, %v829
        %v857 = vpack.c.b16 %v833, %v830
        %v858 = vpack.c.b16 %v834, %v831
        %883 = vmatprep.subr.bf16.mxu0 %v857
        %884 = vmatpush1.bf16.msra.mxu0 %v856
        %885 = vmatprep.subr.bf16.mxu0 %v854
        %886 = vmatpush1.bf16.msra.mxu0 %v853
        %887 = vmatprep.subr.bf16.mxu0 %v851
        %888 = vmatpush1.bf16.msra.mxu0 %v850
        %889 = vmatprep.subr.bf16.mxu0 %v848
        %890 = vmatpush1.bf16.msra.mxu0 %v847
        %891 = vmatprep.subr.bf16.mxu0 %v845
        %892 = vmatpush1.bf16.msra.mxu0 %v844
        %893 = vmatprep.subr.bf16.mxu0 %v842
        %894 = vmatpush1.bf16.msra.mxu0 %v841
        %895 = vmatprep.subr.bf16.mxu0 %v839
        %896 = vmatpush1.bf16.msra.mxu0 %v838
        %897 = vmatprep.subr.bf16.mxu0 %v836
        %898 = vmatpush1.bf16.msra.mxu0 %v835
        %899 = vmatprep.subr.bf16.mxu0 0
        %900 = vmatpush2.bf16.msra.mxu0 0
        %901 = vmatprep.subr.bf16.mxu0 0
        %902 = vmatpush2.bf16.msra.mxu0 0
        %903 = vmatprep.subr.bf16.mxu0 0
        %904 = vmatpush2.bf16.msra.mxu0 0
        %905 = vmatprep.subr.bf16.mxu0 0
        %906 = vmatpush2.bf16.msra.mxu0 0
        %907 = vmatprep.subr.bf16.mxu0 0
        %908 = vmatpush2.bf16.msra.mxu0 0
        %909 = vmatprep.subr.bf16.mxu0 0
        %910 = vmatpush2.bf16.msra.mxu0 0
        %911 = vmatprep.subr.bf16.mxu0 0
        %912 = vmatpush2.bf16.msra.mxu0 0
        %913 = vmatprep.subr.bf16.mxu0 0
        %914 = vmatpush2.bf16.msra.mxu0 0
        %915 = vmatprep.mubr.bf16.mxu0 0
        %916 = vmatmul.mubr.bf16.gmra.mxu0 %v704
        %v917 = vpop.f32.mrf.mxu0
        %v918 = vadd.f32 %v743, %v917
        %v919 = vpop.f32.mrf.mxu0
        %v920 = vadd.f32 %v747, %v919
        %v921 = vpop.f32.mrf.mxu0
        %v922 = vadd.f32 %v743, %v921
        %v923 = vpop.f32.mrf.mxu0
        %v924 = vadd.f32 %v747, %v923
        %925 = vmatprep.mubr.bf16.mxu0 0
        %926 = vmatmul.mubr.bf16.gmra.mxu0 %v705
        %v927 = vpop.f32.mrf.mxu0
        %v928 = vadd.f32 %v743, %v927
        %v929 = vpop.f32.mrf.mxu0
        %v930 = vadd.f32 %v747, %v929
        %v931 = vpop.f32.mrf.mxu0
        %v932 = vpop.f32.mrf.mxu0
        %933 = vdwg.mxu0
        %934 = vmatprep.subr.bf16.mxu0 0
        %935 = vmatpush1.bf16.msra.mxu0 %v858
        %936 = vmatprep.subr.bf16.mxu0 0
        %937 = vmatpush1.bf16.msra.mxu0 %v855
        %938 = vmatprep.subr.bf16.mxu0 0
        %939 = vmatpush1.bf16.msra.mxu0 %v852
        %940 = vmatprep.subr.bf16.mxu0 0
        %941 = vmatpush1.bf16.msra.mxu0 %v849
        %942 = vmatprep.subr.bf16.mxu0 0
        %943 = vmatpush1.bf16.msra.mxu0 %v846
        %944 = vmatprep.subr.bf16.mxu0 0
        %945 = vmatpush1.bf16.msra.mxu0 %v843
        %946 = vmatprep.subr.bf16.mxu0 0
        %947 = vmatpush1.bf16.msra.mxu0 %v840
        %948 = vmatprep.subr.bf16.mxu0 0
        %949 = vmatpush1.bf16.msra.mxu0 %v837
        %950 = vmatprep.subr.bf16.mxu0 0
        %951 = vmatpush2.bf16.msra.mxu0 0
        %952 = vmatprep.subr.bf16.mxu0 0
        %953 = vmatpush2.bf16.msra.mxu0 0
        %954 = vmatprep.subr.bf16.mxu0 0
        %955 = vmatpush2.bf16.msra.mxu0 0
        %956 = vmatprep.subr.bf16.mxu0 0
        %957 = vmatpush2.bf16.msra.mxu0 0
        %958 = vmatprep.subr.bf16.mxu0 0
        %959 = vmatpush2.bf16.msra.mxu0 0
        %960 = vmatprep.subr.bf16.mxu0 0
        %961 = vmatpush2.bf16.msra.mxu0 0
        %962 = vmatprep.subr.bf16.mxu0 0
        %963 = vmatpush2.bf16.msra.mxu0 0
        %964 = vmatprep.subr.bf16.mxu0 0
        %965 = vmatpush2.bf16.msra.mxu0 0
        %966 = vmatprep.mubr.bf16.mxu0 0
        %967 = vmatmul.mubr.bf16.gmra.mxu0 %v704
        %v968 = vpop.f32.mrf.mxu0
        %v969 = vadd.f32 %v751, %v968
        %v970 = vpop.f32.mrf.mxu0
        %v971 = vpop.f32.mrf.mxu0
        %v972 = vadd.f32 %v751, %v971
        %v973 = vpop.f32.mrf.mxu0
        %974 = vmatprep.mubr.bf16.mxu0 0
        %975 = vmatmul.mubr.bf16.gmra.mxu0 %v705
        %v976 = vpop.f32.mrf.mxu0
        %v977 = vadd.f32 %v751, %v976
        %v978 = vpop.f32.mrf.mxu0
        %v979 = vpop.f32.mrf.mxu0
        %v980 = vpop.f32.mrf.mxu0
        %981 = vdwg.mxu0
        %v985 = vrot.slane %v920, 7
        %v986 = vrot.slane %v924, 7
        %v987 = vsel %vm394, %v985, %v986
        %v988 = vrot.slane %v930, 7
        %v989 = vsel %vm394, %v986, %v988
        %v993 = vmul.f32 %v918, %v985
        %v994 = vmul.f32 %v922, %v987
        %v995 = vmul.f32 %v928, %v989
        %vm996 = vcmask 1047558
        %v997 = vsel %vm996, %v993, 0.0
        %998 = vadd.xlane.f32.xlu0 %v997
        %v999 = vpop.xlane.xlu0 %998
        %1000 = vadd.xlane.f32.xlu0 %v994
        %v1001 = vpop.xlane.xlu0 %1000
        %vm1002 = vcmask 1045504
        %v1003 = vsel %vm1002, %v995, 0.0
        %1004 = vadd.xlane.f32.xlu0 %v1003
        %v1005 = vpop.xlane.xlu0 %1004
        %s1006 = sld [smem:[#allocation5 + $0x1]]
        %v1007 = vstv %s1006
        %v1008 = vadd.f32 %v999, %v1007
        %v1009 = vadd.f32 %v1001, %v1007
        %v1010 = vadd.f32 %v1005, %v1007
        %v1011 = vmul.f32 %v918, %v920
        %v1012 = vmul.f32 %v922, %v924
        %v1013 = vmul.f32 %v928, %v930
        %v1014 = vsel %vm996, %v1011, 0.0
        %1015 = vadd.xlane.f32.xlu0 %v1014
        %v1016 = vpop.xlane.xlu0 %1015
        %1017 = vadd.xlane.f32.xlu0 %v1012
        %v1018 = vpop.xlane.xlu0 %1017
        %v1019 = vsel %vm1002, %v1013, 0.0
        %1020 = vadd.xlane.f32.xlu0 %v1019
        %v1021 = vpop.xlane.xlu0 %1020
        %s1022 = sld [smem:[#allocation5 + $0x2]]
        %v1023 = vstv %s1022
        %v1024 = vadd.f32 %v1016, %v1023
        %v1025 = vadd.f32 %v1018, %v1023
        %v1026 = vadd.f32 %v1021, %v1023
        %vm1027 = vcmask 1046528
        %v1028 = vrot.slane %v920, 1
        %v1029 = vrot.slane %v924, 1
        %v1030 = vsel %vm1027, %v1028, %v1029
        %v1031 = vrot.slane %v930, 1
        %v1032 = vsel %vm1027, %v1029, %v1031
        %v1036 = vmul.f32 %v918, %v1030
        %v1037 = vmul.f32 %v922, %v1032
        %v1038 = vmul.f32 %v928, %v1031
        %v1039 = vsel %vm996, %v1036, 0.0
        %1040 = vadd.xlane.f32.xlu0 %v1039
        %v1041 = vpop.xlane.xlu0 %1040
        %1042 = vadd.xlane.f32.xlu0 %v1037
        %v1043 = vpop.xlane.xlu0 %1042
        %v1044 = vsel %vm1002, %v1038, 0.0
        %1045 = vadd.xlane.f32.xlu0 %v1044
        %v1046 = vpop.xlane.xlu0 %1045
        %s1047 = sld [smem:[#allocation5 + $0x3]]
        %v1048 = vstv %s1047
        %v1049 = vadd.f32 %v1041, %v1048
        %v1050 = vadd.f32 %v1043, %v1048
        %v1051 = vadd.f32 %v1046, %v1048
        %v1052 = vmax.f32 %v1008, %v1024
        %v1053 = vmax.f32 %v1009, %v1025
        %v1054 = vmax.f32 %v1010, %v1026
        %v1055 = vmax.f32 %v1052, %v1049
        %v1056 = vmax.f32 %v1053, %v1050
        %v1057 = vmax.f32 %v1054, %v1051
        %v1058 = vsub.f32 %v1008, %v1055
        %v1059 = vsub.f32 %v1009, %v1056
        %v1060 = vsub.f32 %v1010, %v1057
        %v1061 = vmul.f32 %v1058, 1.442695
        %v1062 = vpow.pop %v1061
        %v1063 = vmul.f32 %v1059, 1.442695
        %v1064 = vpow.pop %v1063
        %v1065 = vmul.f32 %v1060, 1.442695
        %v1066 = vpow.pop %v1065
        %v1067 = vsub.f32 %v1024, %v1055
        %v1068 = vsub.f32 %v1025, %v1056
        %v1069 = vsub.f32 %v1026, %v1057
        %v1070 = vmul.f32 %v1067, 1.442695
        %v1071 = vpow.pop %v1070
        %v1072 = vmul.f32 %v1068, 1.442695
        %v1073 = vpow.pop %v1072
        %v1074 = vmul.f32 %v1069, 1.442695
        %v1075 = vpow.pop %v1074
        %v1076 = vsub.f32 %v1049, %v1055
        %v1077 = vsub.f32 %v1050, %v1056
        %v1078 = vsub.f32 %v1051, %v1057
        %v1079 = vmul.f32 %v1076, 1.442695
        %v1080 = vpow.pop %v1079
        %v1081 = vmul.f32 %v1077, 1.442695
        %v1082 = vpow.pop %v1081
        %v1083 = vmul.f32 %v1078, 1.442695
        %v1084 = vpow.pop %v1083
        %v1085 = vadd.f32 %v1062, %v1071
        %v1086 = vadd.f32 %v1064, %v1073
        %v1087 = vadd.f32 %v1066, %v1075
        %v1088 = vadd.f32 %v1085, %v1080
        %v1089 = vadd.f32 %v1086, %v1082
        %v1090 = vadd.f32 %v1087, %v1084
        %v1094 = vrot.slane %v969, 7
        %v1095 = vrot.slane %v972, 7
        %v1096 = vsel %vm394, %v1094, %v1095
        %v1097 = vrot.slane %v977, 7
        %v1098 = vsel %vm394, %v1095, %v1097
        %v1102 = vmul.f32 %v1062, %v1094
        %v1103 = vmul.f32 %v1064, %v1096
        %v1104 = vmul.f32 %v1066, %v1098
        %v1105 = vmul.f32 %v1071, %v969
        %v1106 = vmul.f32 %v1073, %v972
        %v1107 = vmul.f32 %v1075, %v977
        %v1108 = vadd.f32 %v1102, %v1105
        %v1109 = vadd.f32 %v1103, %v1106
        %v1110 = vadd.f32 %v1104, %v1107
        %v1111 = vrot.slane %v969, 1
        %v1112 = vrot.slane %v972, 1
        %v1113 = vsel %vm1027, %v1111, %v1112
        %v1114 = vrot.slane %v977, 1
        %v1115 = vsel %vm1027, %v1112, %v1114
        %v1119 = vmul.f32 %v1080, %v1113
        %v1120 = vmul.f32 %v1082, %v1115
        %v1121 = vmul.f32 %v1084, %v1114
        %v1122 = vadd.f32 %v1108, %v1119
        %v1123 = vadd.f32 %v1109, %v1120
        %v1124 = vadd.f32 %v1110, %v1121
        %v1125 = vrcp.pop %v1088
        %v1126 = vmul.f32 %v1122, %v1125
        %v1127 = vrcp.pop %v1089
        %v1128 = vmul.f32 %v1123, %v1127
        %v1129 = vrcp.pop %v1090
        %v1130 = vmul.f32 %v1124, %v1129
        %v1131 = vlaneseq
        %v1132 = vshrl.u32 %v1131, 7
        %v1133 = vadd.s32 %v1132, 8
        %vm1134 = vcmask 1046534
        %v1135 = vsel %vm1134, %v1011, 0.0
        %1136 = vadd.xlane.f32.xlu0 %v1135
        %v1137 = vpop.xlane.xlu0 %1136
        %v1138 = vadd.f32 %v1137, %v1023
        %v1140 = vmul.f32 %v918, %v1028
        %v1141 = vsel %vm1134, %v1140, 0.0
        %1142 = vadd.xlane.f32.xlu0 %v1141
        %v1143 = vpop.xlane.xlu0 %1142
        %v1144 = vadd.f32 %v1143, %v1048
        %v1145 = vrot.slane %v924, 2
        %v1147 = vmul.f32 %v918, %v1145
        %v1148 = vsel %vm1134, %v1147, 0.0
        %1149 = vadd.xlane.f32.xlu0 %v1148
        %v1150 = vpop.xlane.xlu0 %1149
        %s1151 = sld [smem:[#allocation5 + $0x4]]
        %v1152 = vstv %s1151
        %v1153 = vadd.f32 %v1150, %v1152
        %v1154 = vmax.f32 %v1138, %v1144
        %v1155 = vmax.f32 %v1154, %v1153
        %v1156 = vsub.f32 %v1138, %v1155
        %v1157 = vmul.f32 %v1156, 1.442695
        %v1158 = vpow.pop %v1157
        %v1159 = vsub.f32 %v1144, %v1155
        %v1160 = vmul.f32 %v1159, 1.442695
        %v1161 = vpow.pop %v1160
        %v1162 = vsub.f32 %v1153, %v1155
        %v1163 = vmul.f32 %v1162, 1.442695
        %v1164 = vpow.pop %v1163
        %v1165 = vadd.f32 %v1158, %v1161
        %v1166 = vadd.f32 %v1165, %v1164
        %v1167 = vmul.f32 %v1158, %v969
        %v1169 = vmul.f32 %v1161, %v1111
        %v1170 = vadd.f32 %v1167, %v1169
        %v1171 = vrot.slane %v972, 2
        %v1173 = vmul.f32 %v1164, %v1171
        %v1174 = vadd.f32 %v1170, %v1173
        %vm1175 = vcmp.eq.s32.totalorder %v1132, 0
        %vm1176 = vcmp.eq.s32.totalorder %v1133, 0
        %v1177 = vrcp.pop %v1166
        %v1178 = vmul.f32 %v1174, %v1177
        %v1179 = vlaneseq
        %v1180 = vshrl.u32 %v1179, 7
        %v1181 = vsub.s32 6, %v1180
        %v1182 = vrot.slane %v1178, %v1181
        %v1186 = vrot.slane %v1126, 6
        %v1187 = vrot.slane %v1128, 6
        %v1188 = vsel %vm384, %v1186, %v1187
        %v1189 = vrot.slane %v1130, 6
        %v1190 = vsel %vm384, %v1187, %v1189
        %v1193 = vsel %vm1175, %v1182, %v1188
        %v1194 = vsel %vm1176, %v1182, %v1190
        %v1195 = vpack.c.bf16 %v1194, %v1193
        %v1196 = vld [vmem:[%s5] sm:$0xf]
        %v1197 = vld [vmem:[%s5 + $0x4] sm:$0xf]
        %v1198 = vld [vmem:[%s5 + $0x8] sm:$0xf]
        %v1199 = vld [vmem:[%s5 + $0xc] sm:$0xf]
        %v1200 = vld [vmem:[%s5 + $0x10] sm:$0xf]
        %v1201 = vld [vmem:[%s5 + $0x14] sm:$0xf]
        %v1202 = vld [vmem:[%s5 + $0x18] sm:$0xf]
        %v1203 = vld [vmem:[%s5 + $0x1c] sm:$0xf]
        %v1204 = vld [vmem:[%s5 + $0x20] sm:$0xf]
        %v1205 = vld [vmem:[%s5 + $0x24] sm:$0xf]
        %v1206 = vld [vmem:[%s5 + $0x28] sm:$0xf]
        %v1207 = vld [vmem:[%s5 + $0x2c] sm:$0xf]
        %v1208 = vld [vmem:[%s5 + $0x30] sm:$0xf]
        %v1209 = vld [vmem:[%s5 + $0x34] sm:$0xf]
        %v1210 = vld [vmem:[%s5 + $0x38] sm:$0xf]
        %v1211 = vld [vmem:[%s5 + $0x3c] sm:$0xf]
        %v1212 = vld [vmem:[%s6] sm:$0x1]
        %v1214 = vlaneseq
        %v1215 = vshrl.u32 %v1214, 7
        %v1216 = vsub.s32 0, %v1215
        %v1217 = vrot.slane %v1212, %v1216
        %v1235 = vunpack.c.l.b16 %v1196
        %v1236 = vunpack.c.l.b16 %v1197
        %v1237 = vunpack.c.l.b16 %v1198
        %v1238 = vunpack.c.l.b16 %v1199
        %v1239 = vunpack.c.l.b16 %v1200
        %v1240 = vunpack.c.l.b16 %v1201
        %v1241 = vunpack.c.l.b16 %v1202
        %v1242 = vunpack.c.l.b16 %v1203
        %v1243 = vunpack.c.l.b16 %v1204
        %v1244 = vunpack.c.l.b16 %v1205
        %v1245 = vunpack.c.l.b16 %v1206
        %v1246 = vunpack.c.l.b16 %v1207
        %v1247 = vunpack.c.l.b16 %v1208
        %v1248 = vunpack.c.l.b16 %v1209
        %v1249 = vunpack.c.l.b16 %v1210
        %v1250 = vunpack.c.l.b16 %v1211
        %v1251 = vpack.c.b16 %v1236, %v1235
        %v1252 = vpack.c.b16 %v1238, %v1237
        %v1253 = vpack.c.b16 %v1240, %v1239
        %v1254 = vpack.c.b16 %v1242, %v1241
        %v1255 = vpack.c.b16 %v1244, %v1243
        %v1256 = vpack.c.b16 %v1246, %v1245
        %v1257 = vpack.c.b16 %v1248, %v1247
        %v1258 = vpack.c.b16 %v1250, %v1249
        %1267 = vmatprep.subr.bf16.mxu0 0
        %1268 = vmatpush1.bf16.msra.mxu0 %v1258
        %1269 = vmatprep.subr.bf16.mxu0 0
        %1270 = vmatpush1.bf16.msra.mxu0 %v1257
        %1271 = vmatprep.subr.bf16.mxu0 0
        %1272 = vmatpush1.bf16.msra.mxu0 %v1256
        %1273 = vmatprep.subr.bf16.mxu0 0
        %1274 = vmatpush1.bf16.msra.mxu0 %v1255
        %1275 = vmatprep.subr.bf16.mxu0 0
        %1276 = vmatpush1.bf16.msra.mxu0 %v1254
        %1277 = vmatprep.subr.bf16.mxu0 0
        %1278 = vmatpush1.bf16.msra.mxu0 %v1253
        %1279 = vmatprep.subr.bf16.mxu0 0
        %1280 = vmatpush1.bf16.msra.mxu0 %v1252
        %1281 = vmatprep.subr.bf16.mxu0 0
        %1282 = vmatpush1.bf16.msra.mxu0 %v1251
        %1283 = vmatprep.subr.bf16.mxu0 0
        %1284 = vmatpush2.bf16.msra.mxu0 0
        %1285 = vmatprep.subr.bf16.mxu0 0
        %1286 = vmatpush2.bf16.msra.mxu0 0
        %1287 = vmatprep.subr.bf16.mxu0 0
        %1288 = vmatpush2.bf16.msra.mxu0 0
        %1289 = vmatprep.subr.bf16.mxu0 0
        %1290 = vmatpush2.bf16.msra.mxu0 0
        %1291 = vmatprep.subr.bf16.mxu0 0
        %1292 = vmatpush2.bf16.msra.mxu0 0
        %1293 = vmatprep.subr.bf16.mxu0 0
        %1294 = vmatpush2.bf16.msra.mxu0 0
        %1295 = vmatprep.subr.bf16.mxu0 0
        %1296 = vmatpush2.bf16.msra.mxu0 0
        %1297 = vmatprep.subr.bf16.mxu0 0
        %1298 = vmatpush2.bf16.msra.mxu0 0
        %1299 = vmatprep.mubr.bf16.mxu0 0
        %1300 = vmatmul.mubr.bf16.gmra.mxu0 %v1195
        %v1301 = vpop.f32.mrf.mxu0
        %v1302 = vadd.f32 %v1217, %v1301
        %v1303 = vpop.f32.mrf.mxu0
        %v1304 = vpop.f32.mrf.mxu0
        %v1305 = vadd.f32 %v1217, %v1304
        %v1306 = vpop.f32.mrf.mxu0
        %1307 = vdwg.mxu0
        %v1308 = vmax.f32 %v1302, 0.0
        %v1309 = vmax.f32 %v1305, 0.0
        %v1310 = vpack.c.bf16 %v374, %v373
        %v1311 = vld [vmem:[%s8] sm:$0xf]
        %v1312 = vld [vmem:[%s8 + $0x4] sm:$0xf]
        %v1313 = vld [vmem:[%s8 + $0x8] sm:$0xf]
        %v1314 = vld [vmem:[%s8 + $0xc] sm:$0xf]
        %v1315 = vld [vmem:[%s8 + $0x10] sm:$0xf]
        %v1316 = vld [vmem:[%s8 + $0x14] sm:$0xf]
        %v1317 = vld [vmem:[%s8 + $0x18] sm:$0xf]
        %v1318 = vld [vmem:[%s8 + $0x1c] sm:$0xf]
        %v1319 = vld [vmem:[%s8 + $0x20] sm:$0xf]
        %v1320 = vld [vmem:[%s8 + $0x24] sm:$0xf]
        %v1321 = vld [vmem:[%s8 + $0x28] sm:$0xf]
        %v1322 = vld [vmem:[%s8 + $0x2c] sm:$0xf]
        %v1323 = vld [vmem:[%s8 + $0x30] sm:$0xf]
        %v1324 = vld [vmem:[%s8 + $0x34] sm:$0xf]
        %v1325 = vld [vmem:[%s8 + $0x38] sm:$0xf]
        %v1326 = vld [vmem:[%s8 + $0x3c] sm:$0xf]
        %v1327 = vld [vmem:[%s9] sm:$0x1]
        %v1329 = vlaneseq
        %v1330 = vshrl.u32 %v1329, 7
        %v1331 = vsub.s32 0, %v1330
        %v1332 = vrot.slane %v1327, %v1331
        %v1350 = vunpack.c.l.b16 %v1311
        %v1351 = vunpack.c.l.b16 %v1312
        %v1352 = vunpack.c.l.b16 %v1313
        %v1353 = vunpack.c.l.b16 %v1314
        %v1354 = vunpack.c.l.b16 %v1315
        %v1355 = vunpack.c.l.b16 %v1316
        %v1356 = vunpack.c.l.b16 %v1317
        %v1357 = vunpack.c.l.b16 %v1318
        %v1358 = vunpack.c.l.b16 %v1319
        %v1359 = vunpack.c.l.b16 %v1320
        %v1360 = vunpack.c.l.b16 %v1321
        %v1361 = vunpack.c.l.b16 %v1322
        %v1362 = vunpack.c.l.b16 %v1323
        %v1363 = vunpack.c.l.b16 %v1324
        %v1364 = vunpack.c.l.b16 %v1325
        %v1365 = vunpack.c.l.b16 %v1326
        %v1366 = vpack.c.b16 %v1351, %v1350
        %v1367 = vpack.c.b16 %v1353, %v1352
        %v1368 = vpack.c.b16 %v1355, %v1354
        %v1369 = vpack.c.b16 %v1357, %v1356
        %v1370 = vpack.c.b16 %v1359, %v1358
        %v1371 = vpack.c.b16 %v1361, %v1360
        %v1372 = vpack.c.b16 %v1363, %v1362
        %v1373 = vpack.c.b16 %v1365, %v1364
        %1382 = vmatprep.subr.bf16.mxu0 0
        %1383 = vmatpush1.bf16.msra.mxu0 %v1373
        %1384 = vmatprep.subr.bf16.mxu0 0
        %1385 = vmatpush1.bf16.msra.mxu0 %v1372
        %1386 = vmatprep.subr.bf16.mxu0 0
        %1387 = vmatpush1.bf16.msra.mxu0 %v1371
        %1388 = vmatprep.subr.bf16.mxu0 0
        %1389 = vmatpush1.bf16.msra.mxu0 %v1370
        %1390 = vmatprep.subr.bf16.mxu0 0
        %1391 = vmatpush1.bf16.msra.mxu0 %v1369
        %1392 = vmatprep.subr.bf16.mxu0 0
        %1393 = vmatpush1.bf16.msra.mxu0 %v1368
        %1394 = vmatprep.subr.bf16.mxu0 0
        %1395 = vmatpush1.bf16.msra.mxu0 %v1367
        %1396 = vmatprep.subr.bf16.mxu0 0
        %1397 = vmatpush1.bf16.msra.mxu0 %v1366
        %1398 = vmatprep.subr.bf16.mxu0 0
        %1399 = vmatpush2.bf16.msra.mxu0 0
        %1400 = vmatprep.subr.bf16.mxu0 0
        %1401 = vmatpush2.bf16.msra.mxu0 0
        %1402 = vmatprep.subr.bf16.mxu0 0
        %1403 = vmatpush2.bf16.msra.mxu0 0
        %1404 = vmatprep.subr.bf16.mxu0 0
        %1405 = vmatpush2.bf16.msra.mxu0 0
        %1406 = vmatprep.subr.bf16.mxu0 0
        %1407 = vmatpush2.bf16.msra.mxu0 0
        %1408 = vmatprep.subr.bf16.mxu0 0
        %1409 = vmatpush2.bf16.msra.mxu0 0
        %1410 = vmatprep.subr.bf16.mxu0 0
        %1411 = vmatpush2.bf16.msra.mxu0 0
        %1412 = vmatprep.subr.bf16.mxu0 0
        %1413 = vmatpush2.bf16.msra.mxu0 0
        %1414 = vmatprep.mubr.bf16.mxu0 0
        %1415 = vmatmul.mubr.bf16.gmra.mxu0 %v1310
        %v1416 = vpop.f32.mrf.mxu0
        %v1417 = vadd.f32 %v1332, %v1416
        %v1418 = vpop.f32.mrf.mxu0
        %v1419 = vpop.f32.mrf.mxu0
        %v1420 = vadd.f32 %v1332, %v1419
        %v1421 = vpop.f32.mrf.mxu0
        %1422 = vdwg.mxu0
        %v1423 = vadd.f32 %v1308, %v1417
        %v1424 = vadd.f32 %v1309, %v1420
        %v1425 = vmax.f32 %v1423, 0.0
        %v1426 = vmax.f32 %v1424, 0.0
        %1427 = vst [vmem:[%s366] sm:$0xff] %v1425
        %1428 = vst [vmem:[%s366 + $0x8] sm:$0xff] %v1426
        %s1429 = sand.u32 %s248, 1
        %s1430 = scalar_lea.sflag [#allocation6], %s1429
        %s1431 = sand.u32 %s248, 1
        %s1432 = smul.addr %s1431, 16
        %s1433 = scalar_lea.vmem [#allocation8], %s1432
        // Predicated region
        $region65: #{temporal_block_forward.1} parent=59 // pred_check
          %p1434 = pneg %p258
        $region66: #{temporal_block_forward.1} parent=59 // pred_check_branch
          %1436 = sbr.rel (%p1434) target = $region68
        $region67: #{temporal_block_forward.1} parent=59 // pred_region
          %s1438 = ssub.s32 256, 256
          %1439 = vsyncadd %s1430, %s1438
          %s1440 = smul.addr %s25, 2
          %s1441 = smul.addr %s1440, 128
          %s1442 = scalar_lea.hbm %s10, %s1441
          %s1443 = sshll.u32 %s1433, 4
          %s1444 = int_to_ptr.vmem [resolvable:$true] %s1443
          %1449 = dma.vmem_to_hbm [thread:$0]  %s1444, 256, %s1442, %s1430, 128, 128, 8
        $region68: #{temporal_block_forward.1} parent=59 // pred_fallthru
          _
      $region60: #{temporal_block_forward.1} parent=5 // pred_fallthru
        _
      %p1450 = scmp.le.s32.totalorder 2, %s20
      // Predicated region
      $region69: #{temporal_block_forward.1} parent=5 // pred_check
        %p1451 = pneg %p1450
      $region70: #{temporal_block_forward.1} parent=5 // pred_check_branch
        %1453 = sbr.rel (%p1451) target = $region72
      $region71: #{temporal_block_forward.1} parent=5 // pred_region
        %s1454 = ssub.s32 %s20, 2
        // Predicated region
        $region73: #{temporal_block_forward.1} parent=71 // pred_check
          %p1455 = pneg %p264
        $region74: #{temporal_block_forward.1} parent=71 // pred_check_branch
          %1457 = sbr.rel (%p1455) target = $region76
        $region75: #{temporal_block_forward.1} parent=71 // pred_region
          %s1458 = sand.u32 %s249, 1
          %s1459 = scalar_lea.sflag [#allocation6], %s1458
          %s1460 = sand.u32 %s249, 1
          %s1461 = smul.addr %s1460, 16
          %s1462 = scalar_lea.vmem [#allocation8], %s1461
          %1463 = dma.done %s1459, 256
        $region76: #{temporal_block_forward.1} parent=71 // pred_fallthru
          _
      $region72: #{temporal_block_forward.1} parent=5 // pred_fallthru
        _
    $region6: #{temporal_block_forward.1} parent=1 // loop_footer
      %s24 = sadd.s32 1, %s20
    $region7: #{temporal_block_forward.1} parent=1 // loop_footer_branch
      %19 = sbr.rel target = $region3
    $region8: #{temporal_block_forward.1} parent=1 // loop_exit
      _
    %1464 = vsyncpa [#allocation6], 1
    %s1465 = scalar_lea.sflag [#allocation6], 1
    %1466 = vsyncpa %s1465, 1
    %1467 = vsyncpa [#allocation7], 1
    %s1468 = scalar_lea.sflag [#allocation7], 1
    %1469 = vsyncpa %s1468, 1

</llo_original>
